<compile_context>
chip_gen: v7x
topology: tpu7x:2x2x1
jax: 0.10.0
libtpu: 0.0.40
codegen_flags: <defaults>
</compile_context>

<pallas_src>
import functools

import jax
import jax.numpy as jnp
from jax.experimental import pallas as pl
from jax.experimental.pallas import tpu as pltpu


def _fused_conv_kernel(w_ref, b_ref, x_ref, o_ref, buf0, buf1, *,
                       cin, cout, W, HW, HWP, n_iters):
    """Applies the same 3x3 valid conv `n_iters` times to one batch element.

    w_ref : (cin*9, cout, 1) f32 VMEM   row ci*9+kh*3+kw = weight[:, ci, kh, kw]
    b_ref : (cout, 1)        f32 VMEM
    x_ref : (1, cin, HW)         VMEM   channels on sublanes, H*W on lanes
    o_ref : (1, cout, HW)        VMEM
    buf0/buf1 : (cin, HWP)   f32 VMEM   ping-pong frames (HWP = HW + lane pad)
    """
    # --- init ping-pong frames; pad lanes only ever feed invalid lanes. ---
    pad = jnp.zeros((cin, HWP - HW), jnp.float32)
    buf0[:, HW:] = pad
    buf1[:, HW:] = pad
    buf0[:, :HW] = x_ref[0].astype(jnp.float32)

    # --- hoisted loop-invariant values: 27 weight columns + bias plane. ---
    w_cols = [w_ref[k] for k in range(cin * 9)]             # each (cout, 1)
    bias_plane = jnp.broadcast_to(b_ref[...], (cout, HW))   # (cout, HW)

    bufs = (buf0, buf1)
    for t in range(n_iters):                 # static unroll; all VMEM-resident
        src = bufs[t % 2]
        acc = bias_plane                     # (cout, HW)
        for kh in range(3):
            for kw in range(3):
                s = kh * W + kw              # lane shift for this tap
                for ci in range(cin):
                    row = src[ci:ci + 1, s:s + HW]           # (1, HW) shifted view
                    acc = acc + w_cols[ci * 9 + kh * 3 + kw] * row
        if t == n_iters - 1:
            o_ref[0] = acc.astype(o_ref.dtype)               # lane-dense store
        else:
            bufs[(t + 1) % 2][:, :HW] = acc                  # stays in VMEM


@functools.partial(jax.jit, static_argnames=("n_iters",))
def model_forward(x, weight, bias, *, n_iters):
    """x: (N, Cin, H, W); weight: (Cout, Cin, 3, 3); bias: (Cout,)."""
    n, cin, h, w = x.shape
    cout = weight.shape[0]
    if n_iters == 0:
        return x
    if n_iters > 1:
        assert cin == cout, "repeated application requires Cin == Cout"
    hf, wf = h - 2 * n_iters, w - 2 * n_iters
    assert hf > 0 and wf > 0, "spatial dims too small for n_iters convs"

    hw = h * w
    lane_pad = ((2 * w + 2 + 127) // 128) * 128   # covers max tap shift 2*W+2
    hwp = hw + lane_pad

    x_flat = x.reshape(n, cin, hw)
    # weight[co, ci, kh, kw] -> row (ci*9 + kh*3 + kw) holding column (cout, 1)
    w_prep = jnp.transpose(weight, (1, 2, 3, 0)).reshape(cin * 9, cout, 1)
    w_prep = w_prep.astype(jnp.float32)
    b_prep = bias.reshape(cout, 1).astype(jnp.float32)

    kernel = functools.partial(
        _fused_conv_kernel, cin=cin, cout=cout, W=w, HW=hw, HWP=hwp,
        n_iters=n_iters)

    out_flat = pl.pallas_call(
        kernel,
        out_shape=jax.ShapeDtypeStruct((n, cout, hw), x.dtype),
        grid_spec=pltpu.PrefetchScalarGridSpec(
            num_scalar_prefetch=0,
            grid=(n,),
            in_specs=[
                pl.BlockSpec((cin * 9, cout, 1), lambda i: (0, 0, 0)),  # weights
                pl.BlockSpec((cout, 1), lambda i: (0, 0)),              # bias
                pl.BlockSpec((1, cin, hw), lambda i: (i, 0, 0)),        # x
            ],
            out_specs=pl.BlockSpec((1, cout, hw), lambda i: (i, 0, 0)),
            scratch_shapes=[
                pltpu.VMEM((cin, hwp), jnp.float32),   # ping
                pltpu.VMEM((cin, hwp), jnp.float32),   # pong
            ],
        ),
        compiler_params=pltpu.CompilerParams(
            dimension_semantics=("parallel",)),        # v7x: batch across 2 TCs
    )(w_prep, b_prep, x_flat)

    # Valid output lives in the top-left (hf, wf) corner of each (h, w) frame.
    return out_flat.reshape(n, cout, h, w)[:, :, :hf, :wf]


def _reference_forward(x, weight, bias, n_iters):
    for _ in range(n_iters):
        x = jax.lax.conv_general_dilated(
            x, weight, window_strides=(1, 1), padding="VALID",
            dimension_numbers=("NCHW", "OIHW", "NCHW")) + bias[None, :, None, None]
    return x


if __name__ == "__main__":
    key = jax.random.PRNGKey(0)
    k_x, k_w, k_b = jax.random.split(key, 3)

    n_iters = 3                                  # model(n=3)
    x = jax.random.normal(k_x, (2, 3, 16, 16), dtype=jnp.float32)

    # Deterministic Conv2d(3, 3, 3) parameters (kaiming-uniform-like bound).
    fan_in = 3 * 3 * 3
    bound = 1.0 / (fan_in ** 0.5)
    weight = jax.random.uniform(k_w, (3, 3, 3, 3), jnp.float32, -bound, bound)
    bias = jax.random.uniform(k_b, (3,), jnp.float32, -bound, bound)

    out = model_forward(x, weight, bias, n_iters=n_iters)
    out = jax.block_until_ready(out)

    ref = _reference_forward(x, weight, bias, n_iters)
    assert out.shape == (2, 3, 16 - 2 * n_iters, 16 - 2 * n_iters), out.shape
    assert jnp.allclose(out, ref, atol=1e-4, rtol=1e-4), "mismatch vs reference"

    print("KERNEL_OK")
</pallas_src>

<mosaic_0001>
module attributes {stable_mosaic.version = 11 : i64} {
  func.func @_fused_conv_kernel(%arg0: i32, %arg1: memref<27x3x1xf32, #tpu.memory_space<vmem>>, %arg2: memref<3x1xf32, #tpu.memory_space<vmem>>, %arg3: memref<1x3x256xf32, #tpu.memory_space<vmem>>, %arg4: memref<1x3x256xf32, #tpu.memory_space<vmem>>, %arg5: memref<3x384xf32, #tpu.memory_space<vmem>>, %arg6: memref<3x384xf32, #tpu.memory_space<vmem>>) attributes {dimension_semantics = [#tpu.dimension_semantics<parallel>], iteration_bounds = array<i64: 2>, scalar_prefetch = 0 : i64, scratch_operands = 2 : i64, tpu.core_type = #tpu.core_type<tc>, window_params = [{pipeline_mode = #tpu.pipeline_mode<synchronous>, transform_indices = @transform_0, window_bounds = array<i64: 27, 3, 1>}, {pipeline_mode = #tpu.pipeline_mode<synchronous>, transform_indices = @transform_1, window_bounds = array<i64: 3, 1>}, {transform_indices = @transform_2, window_bounds = array<i64: 1, 3, 256>}, {transform_indices = @transform_3, window_bounds = array<i64: 1, 3, 256>}]} {
    %cst = arith.constant 0.000000e+00 : f32
    %0 = vector.broadcast %cst : f32 to vector<3x128xf32>
    %c0 = arith.constant 0 : index
    %c256 = arith.constant 256 : index
    %1 = vector.load %arg5[%c0, %c256] : memref<3x384xf32, #tpu.memory_space<vmem>>, vector<3x128xf32>
    tpu.vector_store %arg5[%c0, %c256], %0 {strides = array<i32>} : memref<3x384xf32, #tpu.memory_space<vmem>>, vector<3x128xf32>,
    %c0_0 = arith.constant 0 : index
    %c256_1 = arith.constant 256 : index
    %2 = vector.load %arg6[%c0_0, %c256_1] : memref<3x384xf32, #tpu.memory_space<vmem>>, vector<3x128xf32>
    tpu.vector_store %arg6[%c0_0, %c256_1], %0 {strides = array<i32>} : memref<3x384xf32, #tpu.memory_space<vmem>>, vector<3x128xf32>,
    %c0_2 = arith.constant 0 : index
    %c0_3 = arith.constant 0 : index
    %c0_4 = arith.constant 0 : index
    %3 = vector.load %arg3[%c0_2, %c0_3, %c0_4] : memref<1x3x256xf32, #tpu.memory_space<vmem>>, vector<1x3x256xf32>
    %4 = vector.shape_cast %3 : vector<1x3x256xf32> to vector<3x256xf32>
    %c0_5 = arith.constant 0 : index
    %c0_6 = arith.constant 0 : index
    %5 = vector.load %arg5[%c0_5, %c0_6] : memref<3x384xf32, #tpu.memory_space<vmem>>, vector<3x256xf32>
    tpu.vector_store %arg5[%c0_5, %c0_6], %4 {strides = array<i32>} : memref<3x384xf32, #tpu.memory_space<vmem>>, vector<3x256xf32>,
    %c0_7 = arith.constant 0 : index
    %c0_8 = arith.constant 0 : index
    %c0_9 = arith.constant 0 : index
    %6 = vector.load %arg1[%c0_7, %c0_8, %c0_9] : memref<27x3x1xf32, #tpu.memory_space<vmem>>, vector<1x3x1xf32>
    %7 = vector.shape_cast %6 : vector<1x3x1xf32> to vector<3x1xf32>
    %c1 = arith.constant 1 : index
    %c0_10 = arith.constant 0 : index
    %c0_11 = arith.constant 0 : index
    %8 = vector.load %arg1[%c1, %c0_10, %c0_11] : memref<27x3x1xf32, #tpu.memory_space<vmem>>, vector<1x3x1xf32>
    %9 = vector.shape_cast %8 : vector<1x3x1xf32> to vector<3x1xf32>
    %c2 = arith.constant 2 : index
    %c0_12 = arith.constant 0 : index
    %c0_13 = arith.constant 0 : index
    %10 = vector.load %arg1[%c2, %c0_12, %c0_13] : memref<27x3x1xf32, #tpu.memory_space<vmem>>, vector<1x3x1xf32>
    %11 = vector.shape_cast %10 : vector<1x3x1xf32> to vector<3x1xf32>
    %c3 = arith.constant 3 : index
    %c0_14 = arith.constant 0 : index
    %c0_15 = arith.constant 0 : index
    %12 = vector.load %arg1[%c3, %c0_14, %c0_15] : memref<27x3x1xf32, #tpu.memory_space<vmem>>, vector<1x3x1xf32>
    %13 = vector.shape_cast %12 : vector<1x3x1xf32> to vector<3x1xf32>
    %c4 = arith.constant 4 : index
    %c0_16 = arith.constant 0 : index
    %c0_17 = arith.constant 0 : index
    %14 = vector.load %arg1[%c4, %c0_16, %c0_17] : memref<27x3x1xf32, #tpu.memory_space<vmem>>, vector<1x3x1xf32>
    %15 = vector.shape_cast %14 : vector<1x3x1xf32> to vector<3x1xf32>
    %c5 = arith.constant 5 : index
    %c0_18 = arith.constant 0 : index
    %c0_19 = arith.constant 0 : index
    %16 = vector.load %arg1[%c5, %c0_18, %c0_19] : memref<27x3x1xf32, #tpu.memory_space<vmem>>, vector<1x3x1xf32>
    %17 = vector.shape_cast %16 : vector<1x3x1xf32> to vector<3x1xf32>
    %c6 = arith.constant 6 : index
    %c0_20 = arith.constant 0 : index
    %c0_21 = arith.constant 0 : index
    %18 = vector.load %arg1[%c6, %c0_20, %c0_21] : memref<27x3x1xf32, #tpu.memory_space<vmem>>, vector<1x3x1xf32>
    %19 = vector.shape_cast %18 : vector<1x3x1xf32> to vector<3x1xf32>
    %c7 = arith.constant 7 : index
    %c0_22 = arith.constant 0 : index
    %c0_23 = arith.constant 0 : index
    %20 = vector.load %arg1[%c7, %c0_22, %c0_23] : memref<27x3x1xf32, #tpu.memory_space<vmem>>, vector<1x3x1xf32>
    %21 = vector.shape_cast %20 : vector<1x3x1xf32> to vector<3x1xf32>
    %c8 = arith.constant 8 : index
    %c0_24 = arith.constant 0 : index
    %c0_25 = arith.constant 0 : index
    %22 = vector.load %arg1[%c8, %c0_24, %c0_25] : memref<27x3x1xf32, #tpu.memory_space<vmem>>, vector<1x3x1xf32>
    %23 = vector.shape_cast %22 : vector<1x3x1xf32> to vector<3x1xf32>
    %c9 = arith.constant 9 : index
    %c0_26 = arith.constant 0 : index
    %c0_27 = arith.constant 0 : index
    %24 = vector.load %arg1[%c9, %c0_26, %c0_27] : memref<27x3x1xf32, #tpu.memory_space<vmem>>, vector<1x3x1xf32>
    %25 = vector.shape_cast %24 : vector<1x3x1xf32> to vector<3x1xf32>
    %c10 = arith.constant 10 : index
    %c0_28 = arith.constant 0 : index
    %c0_29 = arith.constant 0 : index
    %26 = vector.load %arg1[%c10, %c0_28, %c0_29] : memref<27x3x1xf32, #tpu.memory_space<vmem>>, vector<1x3x1xf32>
    %27 = vector.shape_cast %26 : vector<1x3x1xf32> to vector<3x1xf32>
    %c11 = arith.constant 11 : index
    %c0_30 = arith.constant 0 : index
    %c0_31 = arith.constant 0 : index
    %28 = vector.load %arg1[%c11, %c0_30, %c0_31] : memref<27x3x1xf32, #tpu.memory_space<vmem>>, vector<1x3x1xf32>
    %29 = vector.shape_cast %28 : vector<1x3x1xf32> to vector<3x1xf32>
    %c12 = arith.constant 12 : index
    %c0_32 = arith.constant 0 : index
    %c0_33 = arith.constant 0 : index
    %30 = vector.load %arg1[%c12, %c0_32, %c0_33] : memref<27x3x1xf32, #tpu.memory_space<vmem>>, vector<1x3x1xf32>
    %31 = vector.shape_cast %30 : vector<1x3x1xf32> to vector<3x1xf32>
    %c13 = arith.constant 13 : index
    %c0_34 = arith.constant 0 : index
    %c0_35 = arith.constant 0 : index
    %32 = vector.load %arg1[%c13, %c0_34, %c0_35] : memref<27x3x1xf32, #tpu.memory_space<vmem>>, vector<1x3x1xf32>
    %33 = vector.shape_cast %32 : vector<1x3x1xf32> to vector<3x1xf32>
    %c14 = arith.constant 14 : index
    %c0_36 = arith.constant 0 : index
    %c0_37 = arith.constant 0 : index
    %34 = vector.load %arg1[%c14, %c0_36, %c0_37] : memref<27x3x1xf32, #tpu.memory_space<vmem>>, vector<1x3x1xf32>
    %35 = vector.shape_cast %34 : vector<1x3x1xf32> to vector<3x1xf32>
    %c15 = arith.constant 15 : index
    %c0_38 = arith.constant 0 : index
    %c0_39 = arith.constant 0 : index
    %36 = vector.load %arg1[%c15, %c0_38, %c0_39] : memref<27x3x1xf32, #tpu.memory_space<vmem>>, vector<1x3x1xf32>
    %37 = vector.shape_cast %36 : vector<1x3x1xf32> to vector<3x1xf32>
    %c16 = arith.constant 16 : index
    %c0_40 = arith.constant 0 : index
    %c0_41 = arith.constant 0 : index
    %38 = vector.load %arg1[%c16, %c0_40, %c0_41] : memref<27x3x1xf32, #tpu.memory_space<vmem>>, vector<1x3x1xf32>
    %39 = vector.shape_cast %38 : vector<1x3x1xf32> to vector<3x1xf32>
    %c17 = arith.constant 17 : index
    %c0_42 = arith.constant 0 : index
    %c0_43 = arith.constant 0 : index
    %40 = vector.load %arg1[%c17, %c0_42, %c0_43] : memref<27x3x1xf32, #tpu.memory_space<vmem>>, vector<1x3x1xf32>
    %41 = vector.shape_cast %40 : vector<1x3x1xf32> to vector<3x1xf32>
    %c18 = arith.constant 18 : index
    %c0_44 = arith.constant 0 : index
    %c0_45 = arith.constant 0 : index
    %42 = vector.load %arg1[%c18, %c0_44, %c0_45] : memref<27x3x1xf32, #tpu.memory_space<vmem>>, vector<1x3x1xf32>
    %43 = vector.shape_cast %42 : vector<1x3x1xf32> to vector<3x1xf32>
    %c19 = arith.constant 19 : index
    %c0_46 = arith.constant 0 : index
    %c0_47 = arith.constant 0 : index
    %44 = vector.load %arg1[%c19, %c0_46, %c0_47] : memref<27x3x1xf32, #tpu.memory_space<vmem>>, vector<1x3x1xf32>
    %45 = vector.shape_cast %44 : vector<1x3x1xf32> to vector<3x1xf32>
    %c20 = arith.constant 20 : index
    %c0_48 = arith.constant 0 : index
    %c0_49 = arith.constant 0 : index
    %46 = vector.load %arg1[%c20, %c0_48, %c0_49] : memref<27x3x1xf32, #tpu.memory_space<vmem>>, vector<1x3x1xf32>
    %47 = vector.shape_cast %46 : vector<1x3x1xf32> to vector<3x1xf32>
    %c21 = arith.constant 21 : index
    %c0_50 = arith.constant 0 : index
    %c0_51 = arith.constant 0 : index
    %48 = vector.load %arg1[%c21, %c0_50, %c0_51] : memref<27x3x1xf32, #tpu.memory_space<vmem>>, vector<1x3x1xf32>
    %49 = vector.shape_cast %48 : vector<1x3x1xf32> to vector<3x1xf32>
    %c22 = arith.constant 22 : index
    %c0_52 = arith.constant 0 : index
    %c0_53 = arith.constant 0 : index
    %50 = vector.load %arg1[%c22, %c0_52, %c0_53] : memref<27x3x1xf32, #tpu.memory_space<vmem>>, vector<1x3x1xf32>
    %51 = vector.shape_cast %50 : vector<1x3x1xf32> to vector<3x1xf32>
    %c23 = arith.constant 23 : index
    %c0_54 = arith.constant 0 : index
    %c0_55 = arith.constant 0 : index
    %52 = vector.load %arg1[%c23, %c0_54, %c0_55] : memref<27x3x1xf32, #tpu.memory_space<vmem>>, vector<1x3x1xf32>
    %53 = vector.shape_cast %52 : vector<1x3x1xf32> to vector<3x1xf32>
    %c24 = arith.constant 24 : index
    %c0_56 = arith.constant 0 : index
    %c0_57 = arith.constant 0 : index
    %54 = vector.load %arg1[%c24, %c0_56, %c0_57] : memref<27x3x1xf32, #tpu.memory_space<vmem>>, vector<1x3x1xf32>
    %55 = vector.shape_cast %54 : vector<1x3x1xf32> to vector<3x1xf32>
    %c25 = arith.constant 25 : index
    %c0_58 = arith.constant 0 : index
    %c0_59 = arith.constant 0 : index
    %56 = vector.load %arg1[%c25, %c0_58, %c0_59] : memref<27x3x1xf32, #tpu.memory_space<vmem>>, vector<1x3x1xf32>
    %57 = vector.shape_cast %56 : vector<1x3x1xf32> to vector<3x1xf32>
    %c26 = arith.constant 26 : index
    %c0_60 = arith.constant 0 : index
    %c0_61 = arith.constant 0 : index
    %58 = vector.load %arg1[%c26, %c0_60, %c0_61] : memref<27x3x1xf32, #tpu.memory_space<vmem>>, vector<1x3x1xf32>
    %59 = vector.shape_cast %58 : vector<1x3x1xf32> to vector<3x1xf32>
    %c0_62 = arith.constant 0 : index
    %c0_63 = arith.constant 0 : index
    %60 = vector.load %arg2[%c0_62, %c0_63] : memref<3x1xf32, #tpu.memory_space<vmem>>, vector<3x1xf32>
    %61 = vector.shape_cast %60 : vector<3x1xf32> to vector<3x1xf32>
    %62 = vector.broadcast %61 : vector<3x1xf32> to vector<3x256xf32>
    %c0_64 = arith.constant 0 : index
    %c0_65 = arith.constant 0 : index
    %63 = vector.load %arg5[%c0_64, %c0_65] : memref<3x384xf32, #tpu.memory_space<vmem>>, vector<1x256xf32>
    %64 = vector.broadcast %7 : vector<3x1xf32> to vector<3x256xf32>
    %65 = vector.broadcast %63 : vector<1x256xf32> to vector<3x256xf32>
    %66 = arith.mulf %64, %65 : vector<3x256xf32>
    %67 = arith.addf %62, %66 : vector<3x256xf32>
    %c1_66 = arith.constant 1 : index
    %c0_67 = arith.constant 0 : index
    %68 = vector.load %arg5[%c1_66, %c0_67] : memref<3x384xf32, #tpu.memory_space<vmem>>, vector<1x256xf32>
    %69 = vector.broadcast %25 : vector<3x1xf32> to vector<3x256xf32>
    %70 = vector.broadcast %68 : vector<1x256xf32> to vector<3x256xf32>
    %71 = arith.mulf %69, %70 : vector<3x256xf32>
    %72 = arith.addf %67, %71 : vector<3x256xf32>
    %c2_68 = arith.constant 2 : index
    %c0_69 = arith.constant 0 : index
    %73 = vector.load %arg5[%c2_68, %c0_69] : memref<3x384xf32, #tpu.memory_space<vmem>>, vector<1x256xf32>
    %74 = vector.broadcast %43 : vector<3x1xf32> to vector<3x256xf32>
    %75 = vector.broadcast %73 : vector<1x256xf32> to vector<3x256xf32>
    %76 = arith.mulf %74, %75 : vector<3x256xf32>
    %77 = arith.addf %72, %76 : vector<3x256xf32>
    %c0_70 = arith.constant 0 : index
    %c1_71 = arith.constant 1 : index
    %78 = vector.load %arg5[%c0_70, %c1_71] : memref<3x384xf32, #tpu.memory_space<vmem>>, vector<1x256xf32>
    %79 = vector.broadcast %9 : vector<3x1xf32> to vector<3x256xf32>
    %80 = vector.broadcast %78 : vector<1x256xf32> to vector<3x256xf32>
    %81 = arith.mulf %79, %80 : vector<3x256xf32>
    %82 = arith.addf %77, %81 : vector<3x256xf32>
    %c1_72 = arith.constant 1 : index
    %c1_73 = arith.constant 1 : index
    %83 = vector.load %arg5[%c1_72, %c1_73] : memref<3x384xf32, #tpu.memory_space<vmem>>, vector<1x256xf32>
    %84 = vector.broadcast %27 : vector<3x1xf32> to vector<3x256xf32>
    %85 = vector.broadcast %83 : vector<1x256xf32> to vector<3x256xf32>
    %86 = arith.mulf %84, %85 : vector<3x256xf32>
    %87 = arith.addf %82, %86 : vector<3x256xf32>
    %c2_74 = arith.constant 2 : index
    %c1_75 = arith.constant 1 : index
    %88 = vector.load %arg5[%c2_74, %c1_75] : memref<3x384xf32, #tpu.memory_space<vmem>>, vector<1x256xf32>
    %89 = vector.broadcast %45 : vector<3x1xf32> to vector<3x256xf32>
    %90 = vector.broadcast %88 : vector<1x256xf32> to vector<3x256xf32>
    %91 = arith.mulf %89, %90 : vector<3x256xf32>
    %92 = arith.addf %87, %91 : vector<3x256xf32>
    %c0_76 = arith.constant 0 : index
    %c2_77 = arith.constant 2 : index
    %93 = vector.load %arg5[%c0_76, %c2_77] : memref<3x384xf32, #tpu.memory_space<vmem>>, vector<1x256xf32>
    %94 = vector.broadcast %11 : vector<3x1xf32> to vector<3x256xf32>
    %95 = vector.broadcast %93 : vector<1x256xf32> to vector<3x256xf32>
    %96 = arith.mulf %94, %95 : vector<3x256xf32>
    %97 = arith.addf %92, %96 : vector<3x256xf32>
    %c1_78 = arith.constant 1 : index
    %c2_79 = arith.constant 2 : index
    %98 = vector.load %arg5[%c1_78, %c2_79] : memref<3x384xf32, #tpu.memory_space<vmem>>, vector<1x256xf32>
    %99 = vector.broadcast %29 : vector<3x1xf32> to vector<3x256xf32>
    %100 = vector.broadcast %98 : vector<1x256xf32> to vector<3x256xf32>
    %101 = arith.mulf %99, %100 : vector<3x256xf32>
    %102 = arith.addf %97, %101 : vector<3x256xf32>
    %c2_80 = arith.constant 2 : index
    %c2_81 = arith.constant 2 : index
    %103 = vector.load %arg5[%c2_80, %c2_81] : memref<3x384xf32, #tpu.memory_space<vmem>>, vector<1x256xf32>
    %104 = vector.broadcast %47 : vector<3x1xf32> to vector<3x256xf32>
    %105 = vector.broadcast %103 : vector<1x256xf32> to vector<3x256xf32>
    %106 = arith.mulf %104, %105 : vector<3x256xf32>
    %107 = arith.addf %102, %106 : vector<3x256xf32>
    %c0_82 = arith.constant 0 : index
    %c16_83 = arith.constant 16 : index
    %108 = vector.load %arg5[%c0_82, %c16_83] : memref<3x384xf32, #tpu.memory_space<vmem>>, vector<1x256xf32>
    %109 = vector.broadcast %13 : vector<3x1xf32> to vector<3x256xf32>
    %110 = vector.broadcast %108 : vector<1x256xf32> to vector<3x256xf32>
    %111 = arith.mulf %109, %110 : vector<3x256xf32>
    %112 = arith.addf %107, %111 : vector<3x256xf32>
    %c1_84 = arith.constant 1 : index
    %c16_85 = arith.constant 16 : index
    %113 = vector.load %arg5[%c1_84, %c16_85] : memref<3x384xf32, #tpu.memory_space<vmem>>, vector<1x256xf32>
    %114 = vector.broadcast %31 : vector<3x1xf32> to vector<3x256xf32>
    %115 = vector.broadcast %113 : vector<1x256xf32> to vector<3x256xf32>
    %116 = arith.mulf %114, %115 : vector<3x256xf32>
    %117 = arith.addf %112, %116 : vector<3x256xf32>
    %c2_86 = arith.constant 2 : index
    %c16_87 = arith.constant 16 : index
    %118 = vector.load %arg5[%c2_86, %c16_87] : memref<3x384xf32, #tpu.memory_space<vmem>>, vector<1x256xf32>
    %119 = vector.broadcast %49 : vector<3x1xf32> to vector<3x256xf32>
    %120 = vector.broadcast %118 : vector<1x256xf32> to vector<3x256xf32>
    %121 = arith.mulf %119, %120 : vector<3x256xf32>
    %122 = arith.addf %117, %121 : vector<3x256xf32>
    %c0_88 = arith.constant 0 : index
    %c17_89 = arith.constant 17 : index
    %123 = vector.load %arg5[%c0_88, %c17_89] : memref<3x384xf32, #tpu.memory_space<vmem>>, vector<1x256xf32>
    %124 = vector.broadcast %15 : vector<3x1xf32> to vector<3x256xf32>
    %125 = vector.broadcast %123 : vector<1x256xf32> to vector<3x256xf32>
    %126 = arith.mulf %124, %125 : vector<3x256xf32>
    %127 = arith.addf %122, %126 : vector<3x256xf32>
    %c1_90 = arith.constant 1 : index
    %c17_91 = arith.constant 17 : index
    %128 = vector.load %arg5[%c1_90, %c17_91] : memref<3x384xf32, #tpu.memory_space<vmem>>, vector<1x256xf32>
    %129 = vector.broadcast %33 : vector<3x1xf32> to vector<3x256xf32>
    %130 = vector.broadcast %128 : vector<1x256xf32> to vector<3x256xf32>
    %131 = arith.mulf %129, %130 : vector<3x256xf32>
    %132 = arith.addf %127, %131 : vector<3x256xf32>
    %c2_92 = arith.constant 2 : index
    %c17_93 = arith.constant 17 : index
    %133 = vector.load %arg5[%c2_92, %c17_93] : memref<3x384xf32, #tpu.memory_space<vmem>>, vector<1x256xf32>
    %134 = vector.broadcast %51 : vector<3x1xf32> to vector<3x256xf32>
    %135 = vector.broadcast %133 : vector<1x256xf32> to vector<3x256xf32>
    %136 = arith.mulf %134, %135 : vector<3x256xf32>
    %137 = arith.addf %132, %136 : vector<3x256xf32>
    %c0_94 = arith.constant 0 : index
    %c18_95 = arith.constant 18 : index
    %138 = vector.load %arg5[%c0_94, %c18_95] : memref<3x384xf32, #tpu.memory_space<vmem>>, vector<1x256xf32>
    %139 = vector.broadcast %17 : vector<3x1xf32> to vector<3x256xf32>
    %140 = vector.broadcast %138 : vector<1x256xf32> to vector<3x256xf32>
    %141 = arith.mulf %139, %140 : vector<3x256xf32>
    %142 = arith.addf %137, %141 : vector<3x256xf32>
    %c1_96 = arith.constant 1 : index
    %c18_97 = arith.constant 18 : index
    %143 = vector.load %arg5[%c1_96, %c18_97] : memref<3x384xf32, #tpu.memory_space<vmem>>, vector<1x256xf32>
    %144 = vector.broadcast %35 : vector<3x1xf32> to vector<3x256xf32>
    %145 = vector.broadcast %143 : vector<1x256xf32> to vector<3x256xf32>
    %146 = arith.mulf %144, %145 : vector<3x256xf32>
    %147 = arith.addf %142, %146 : vector<3x256xf32>
    %c2_98 = arith.constant 2 : index
    %c18_99 = arith.constant 18 : index
    %148 = vector.load %arg5[%c2_98, %c18_99] : memref<3x384xf32, #tpu.memory_space<vmem>>, vector<1x256xf32>
    %149 = vector.broadcast %53 : vector<3x1xf32> to vector<3x256xf32>
    %150 = vector.broadcast %148 : vector<1x256xf32> to vector<3x256xf32>
    %151 = arith.mulf %149, %150 : vector<3x256xf32>
    %152 = arith.addf %147, %151 : vector<3x256xf32>
    %c0_100 = arith.constant 0 : index
    %c32 = arith.constant 32 : index
    %153 = vector.load %arg5[%c0_100, %c32] : memref<3x384xf32, #tpu.memory_space<vmem>>, vector<1x256xf32>
    %154 = vector.broadcast %19 : vector<3x1xf32> to vector<3x256xf32>
    %155 = vector.broadcast %153 : vector<1x256xf32> to vector<3x256xf32>
    %156 = arith.mulf %154, %155 : vector<3x256xf32>
    %157 = arith.addf %152, %156 : vector<3x256xf32>
    %c1_101 = arith.constant 1 : index
    %c32_102 = arith.constant 32 : index
    %158 = vector.load %arg5[%c1_101, %c32_102] : memref<3x384xf32, #tpu.memory_space<vmem>>, vector<1x256xf32>
    %159 = vector.broadcast %37 : vector<3x1xf32> to vector<3x256xf32>
    %160 = vector.broadcast %158 : vector<1x256xf32> to vector<3x256xf32>
    %161 = arith.mulf %159, %160 : vector<3x256xf32>
    %162 = arith.addf %157, %161 : vector<3x256xf32>
    %c2_103 = arith.constant 2 : index
    %c32_104 = arith.constant 32 : index
    %163 = vector.load %arg5[%c2_103, %c32_104] : memref<3x384xf32, #tpu.memory_space<vmem>>, vector<1x256xf32>
    %164 = vector.broadcast %55 : vector<3x1xf32> to vector<3x256xf32>
    %165 = vector.broadcast %163 : vector<1x256xf32> to vector<3x256xf32>
    %166 = arith.mulf %164, %165 : vector<3x256xf32>
    %167 = arith.addf %162, %166 : vector<3x256xf32>
    %c0_105 = arith.constant 0 : index
    %c33 = arith.constant 33 : index
    %168 = vector.load %arg5[%c0_105, %c33] : memref<3x384xf32, #tpu.memory_space<vmem>>, vector<1x256xf32>
    %169 = vector.broadcast %21 : vector<3x1xf32> to vector<3x256xf32>
    %170 = vector.broadcast %168 : vector<1x256xf32> to vector<3x256xf32>
    %171 = arith.mulf %169, %170 : vector<3x256xf32>
    %172 = arith.addf %167, %171 : vector<3x256xf32>
    %c1_106 = arith.constant 1 : index
    %c33_107 = arith.constant 33 : index
    %173 = vector.load %arg5[%c1_106, %c33_107] : memref<3x384xf32, #tpu.memory_space<vmem>>, vector<1x256xf32>
    %174 = vector.broadcast %39 : vector<3x1xf32> to vector<3x256xf32>
    %175 = vector.broadcast %173 : vector<1x256xf32> to vector<3x256xf32>
    %176 = arith.mulf %174, %175 : vector<3x256xf32>
    %177 = arith.addf %172, %176 : vector<3x256xf32>
    %c2_108 = arith.constant 2 : index
    %c33_109 = arith.constant 33 : index
    %178 = vector.load %arg5[%c2_108, %c33_109] : memref<3x384xf32, #tpu.memory_space<vmem>>, vector<1x256xf32>
    %179 = vector.broadcast %57 : vector<3x1xf32> to vector<3x256xf32>
    %180 = vector.broadcast %178 : vector<1x256xf32> to vector<3x256xf32>
    %181 = arith.mulf %179, %180 : vector<3x256xf32>
    %182 = arith.addf %177, %181 : vector<3x256xf32>
    %c0_110 = arith.constant 0 : index
    %c34 = arith.constant 34 : index
    %183 = vector.load %arg5[%c0_110, %c34] : memref<3x384xf32, #tpu.memory_space<vmem>>, vector<1x256xf32>
    %184 = vector.broadcast %23 : vector<3x1xf32> to vector<3x256xf32>
    %185 = vector.broadcast %183 : vector<1x256xf32> to vector<3x256xf32>
    %186 = arith.mulf %184, %185 : vector<3x256xf32>
    %187 = arith.addf %182, %186 : vector<3x256xf32>
    %c1_111 = arith.constant 1 : index
    %c34_112 = arith.constant 34 : index
    %188 = vector.load %arg5[%c1_111, %c34_112] : memref<3x384xf32, #tpu.memory_space<vmem>>, vector<1x256xf32>
    %189 = vector.broadcast %41 : vector<3x1xf32> to vector<3x256xf32>
    %190 = vector.broadcast %188 : vector<1x256xf32> to vector<3x256xf32>
    %191 = arith.mulf %189, %190 : vector<3x256xf32>
    %192 = arith.addf %187, %191 : vector<3x256xf32>
    %c2_113 = arith.constant 2 : index
    %c34_114 = arith.constant 34 : index
    %193 = vector.load %arg5[%c2_113, %c34_114] : memref<3x384xf32, #tpu.memory_space<vmem>>, vector<1x256xf32>
    %194 = vector.broadcast %59 : vector<3x1xf32> to vector<3x256xf32>
    %195 = vector.broadcast %193 : vector<1x256xf32> to vector<3x256xf32>
    %196 = arith.mulf %194, %195 : vector<3x256xf32>
    %197 = arith.addf %192, %196 : vector<3x256xf32>
    %c0_115 = arith.constant 0 : index
    %c0_116 = arith.constant 0 : index
    %198 = vector.load %arg6[%c0_115, %c0_116] : memref<3x384xf32, #tpu.memory_space<vmem>>, vector<3x256xf32>
    tpu.vector_store %arg6[%c0_115, %c0_116], %197 {strides = array<i32>} : memref<3x384xf32, #tpu.memory_space<vmem>>, vector<3x256xf32>,
    %c0_117 = arith.constant 0 : index
    %c0_118 = arith.constant 0 : index
    %199 = vector.load %arg6[%c0_117, %c0_118] : memref<3x384xf32, #tpu.memory_space<vmem>>, vector<1x256xf32>
    %200 = vector.broadcast %7 : vector<3x1xf32> to vector<3x256xf32>
    %201 = vector.broadcast %199 : vector<1x256xf32> to vector<3x256xf32>
    %202 = arith.mulf %200, %201 : vector<3x256xf32>
    %203 = arith.addf %62, %202 : vector<3x256xf32>
    %c1_119 = arith.constant 1 : index
    %c0_120 = arith.constant 0 : index
    %204 = vector.load %arg6[%c1_119, %c0_120] : memref<3x384xf32, #tpu.memory_space<vmem>>, vector<1x256xf32>
    %205 = vector.broadcast %25 : vector<3x1xf32> to vector<3x256xf32>
    %206 = vector.broadcast %204 : vector<1x256xf32> to vector<3x256xf32>
    %207 = arith.mulf %205, %206 : vector<3x256xf32>
    %208 = arith.addf %203, %207 : vector<3x256xf32>
    %c2_121 = arith.constant 2 : index
    %c0_122 = arith.constant 0 : index
    %209 = vector.load %arg6[%c2_121, %c0_122] : memref<3x384xf32, #tpu.memory_space<vmem>>, vector<1x256xf32>
    %210 = vector.broadcast %43 : vector<3x1xf32> to vector<3x256xf32>
    %211 = vector.broadcast %209 : vector<1x256xf32> to vector<3x256xf32>
    %212 = arith.mulf %210, %211 : vector<3x256xf32>
    %213 = arith.addf %208, %212 : vector<3x256xf32>
    %c0_123 = arith.constant 0 : index
    %c1_124 = arith.constant 1 : index
    %214 = vector.load %arg6[%c0_123, %c1_124] : memref<3x384xf32, #tpu.memory_space<vmem>>, vector<1x256xf32>
    %215 = vector.broadcast %9 : vector<3x1xf32> to vector<3x256xf32>
    %216 = vector.broadcast %214 : vector<1x256xf32> to vector<3x256xf32>
    %217 = arith.mulf %215, %216 : vector<3x256xf32>
    %218 = arith.addf %213, %217 : vector<3x256xf32>
    %c1_125 = arith.constant 1 : index
    %c1_126 = arith.constant 1 : index
    %219 = vector.load %arg6[%c1_125, %c1_126] : memref<3x384xf32, #tpu.memory_space<vmem>>, vector<1x256xf32>
    %220 = vector.broadcast %27 : vector<3x1xf32> to vector<3x256xf32>
    %221 = vector.broadcast %219 : vector<1x256xf32> to vector<3x256xf32>
    %222 = arith.mulf %220, %221 : vector<3x256xf32>
    %223 = arith.addf %218, %222 : vector<3x256xf32>
    %c2_127 = arith.constant 2 : index
    %c1_128 = arith.constant 1 : index
    %224 = vector.load %arg6[%c2_127, %c1_128] : memref<3x384xf32, #tpu.memory_space<vmem>>, vector<1x256xf32>
    %225 = vector.broadcast %45 : vector<3x1xf32> to vector<3x256xf32>
    %226 = vector.broadcast %224 : vector<1x256xf32> to vector<3x256xf32>
    %227 = arith.mulf %225, %226 : vector<3x256xf32>
    %228 = arith.addf %223, %227 : vector<3x256xf32>
    %c0_129 = arith.constant 0 : index
    %c2_130 = arith.constant 2 : index
    %229 = vector.load %arg6[%c0_129, %c2_130] : memref<3x384xf32, #tpu.memory_space<vmem>>, vector<1x256xf32>
    %230 = vector.broadcast %11 : vector<3x1xf32> to vector<3x256xf32>
    %231 = vector.broadcast %229 : vector<1x256xf32> to vector<3x256xf32>
    %232 = arith.mulf %230, %231 : vector<3x256xf32>
    %233 = arith.addf %228, %232 : vector<3x256xf32>
    %c1_131 = arith.constant 1 : index
    %c2_132 = arith.constant 2 : index
    %234 = vector.load %arg6[%c1_131, %c2_132] : memref<3x384xf32, #tpu.memory_space<vmem>>, vector<1x256xf32>
    %235 = vector.broadcast %29 : vector<3x1xf32> to vector<3x256xf32>
    %236 = vector.broadcast %234 : vector<1x256xf32> to vector<3x256xf32>
    %237 = arith.mulf %235, %236 : vector<3x256xf32>
    %238 = arith.addf %233, %237 : vector<3x256xf32>
    %c2_133 = arith.constant 2 : index
    %c2_134 = arith.constant 2 : index
    %239 = vector.load %arg6[%c2_133, %c2_134] : memref<3x384xf32, #tpu.memory_space<vmem>>, vector<1x256xf32>
    %240 = vector.broadcast %47 : vector<3x1xf32> to vector<3x256xf32>
    %241 = vector.broadcast %239 : vector<1x256xf32> to vector<3x256xf32>
    %242 = arith.mulf %240, %241 : vector<3x256xf32>
    %243 = arith.addf %238, %242 : vector<3x256xf32>
    %c0_135 = arith.constant 0 : index
    %c16_136 = arith.constant 16 : index
    %244 = vector.load %arg6[%c0_135, %c16_136] : memref<3x384xf32, #tpu.memory_space<vmem>>, vector<1x256xf32>
    %245 = vector.broadcast %13 : vector<3x1xf32> to vector<3x256xf32>
    %246 = vector.broadcast %244 : vector<1x256xf32> to vector<3x256xf32>
    %247 = arith.mulf %245, %246 : vector<3x256xf32>
    %248 = arith.addf %243, %247 : vector<3x256xf32>
    %c1_137 = arith.constant 1 : index
    %c16_138 = arith.constant 16 : index
    %249 = vector.load %arg6[%c1_137, %c16_138] : memref<3x384xf32, #tpu.memory_space<vmem>>, vector<1x256xf32>
    %250 = vector.broadcast %31 : vector<3x1xf32> to vector<3x256xf32>
    %251 = vector.broadcast %249 : vector<1x256xf32> to vector<3x256xf32>
    %252 = arith.mulf %250, %251 : vector<3x256xf32>
    %253 = arith.addf %248, %252 : vector<3x256xf32>
    %c2_139 = arith.constant 2 : index
    %c16_140 = arith.constant 16 : index
    %254 = vector.load %arg6[%c2_139, %c16_140] : memref<3x384xf32, #tpu.memory_space<vmem>>, vector<1x256xf32>
    %255 = vector.broadcast %49 : vector<3x1xf32> to vector<3x256xf32>
    %256 = vector.broadcast %254 : vector<1x256xf32> to vector<3x256xf32>
    %257 = arith.mulf %255, %256 : vector<3x256xf32>
    %258 = arith.addf %253, %257 : vector<3x256xf32>
    %c0_141 = arith.constant 0 : index
    %c17_142 = arith.constant 17 : index
    %259 = vector.load %arg6[%c0_141, %c17_142] : memref<3x384xf32, #tpu.memory_space<vmem>>, vector<1x256xf32>
    %260 = vector.broadcast %15 : vector<3x1xf32> to vector<3x256xf32>
    %261 = vector.broadcast %259 : vector<1x256xf32> to vector<3x256xf32>
    %262 = arith.mulf %260, %261 : vector<3x256xf32>
    %263 = arith.addf %258, %262 : vector<3x256xf32>
    %c1_143 = arith.constant 1 : index
    %c17_144 = arith.constant 17 : index
    %264 = vector.load %arg6[%c1_143, %c17_144] : memref<3x384xf32, #tpu.memory_space<vmem>>, vector<1x256xf32>
    %265 = vector.broadcast %33 : vector<3x1xf32> to vector<3x256xf32>
    %266 = vector.broadcast %264 : vector<1x256xf32> to vector<3x256xf32>
    %267 = arith.mulf %265, %266 : vector<3x256xf32>
    %268 = arith.addf %263, %267 : vector<3x256xf32>
    %c2_145 = arith.constant 2 : index
    %c17_146 = arith.constant 17 : index
    %269 = vector.load %arg6[%c2_145, %c17_146] : memref<3x384xf32, #tpu.memory_space<vmem>>, vector<1x256xf32>
    %270 = vector.broadcast %51 : vector<3x1xf32> to vector<3x256xf32>
    %271 = vector.broadcast %269 : vector<1x256xf32> to vector<3x256xf32>
    %272 = arith.mulf %270, %271 : vector<3x256xf32>
    %273 = arith.addf %268, %272 : vector<3x256xf32>
    %c0_147 = arith.constant 0 : index
    %c18_148 = arith.constant 18 : index
    %274 = vector.load %arg6[%c0_147, %c18_148] : memref<3x384xf32, #tpu.memory_space<vmem>>, vector<1x256xf32>
    %275 = vector.broadcast %17 : vector<3x1xf32> to vector<3x256xf32>
    %276 = vector.broadcast %274 : vector<1x256xf32> to vector<3x256xf32>
    %277 = arith.mulf %275, %276 : vector<3x256xf32>
    %278 = arith.addf %273, %277 : vector<3x256xf32>
    %c1_149 = arith.constant 1 : index
    %c18_150 = arith.constant 18 : index
    %279 = vector.load %arg6[%c1_149, %c18_150] : memref<3x384xf32, #tpu.memory_space<vmem>>, vector<1x256xf32>
    %280 = vector.broadcast %35 : vector<3x1xf32> to vector<3x256xf32>
    %281 = vector.broadcast %279 : vector<1x256xf32> to vector<3x256xf32>
    %282 = arith.mulf %280, %281 : vector<3x256xf32>
    %283 = arith.addf %278, %282 : vector<3x256xf32>
    %c2_151 = arith.constant 2 : index
    %c18_152 = arith.constant 18 : index
    %284 = vector.load %arg6[%c2_151, %c18_152] : memref<3x384xf32, #tpu.memory_space<vmem>>, vector<1x256xf32>
    %285 = vector.broadcast %53 : vector<3x1xf32> to vector<3x256xf32>
    %286 = vector.broadcast %284 : vector<1x256xf32> to vector<3x256xf32>
    %287 = arith.mulf %285, %286 : vector<3x256xf32>
    %288 = arith.addf %283, %287 : vector<3x256xf32>
    %c0_153 = arith.constant 0 : index
    %c32_154 = arith.constant 32 : index
    %289 = vector.load %arg6[%c0_153, %c32_154] : memref<3x384xf32, #tpu.memory_space<vmem>>, vector<1x256xf32>
    %290 = vector.broadcast %19 : vector<3x1xf32> to vector<3x256xf32>
    %291 = vector.broadcast %289 : vector<1x256xf32> to vector<3x256xf32>
    %292 = arith.mulf %290, %291 : vector<3x256xf32>
    %293 = arith.addf %288, %292 : vector<3x256xf32>
    %c1_155 = arith.constant 1 : index
    %c32_156 = arith.constant 32 : index
    %294 = vector.load %arg6[%c1_155, %c32_156] : memref<3x384xf32, #tpu.memory_space<vmem>>, vector<1x256xf32>
    %295 = vector.broadcast %37 : vector<3x1xf32> to vector<3x256xf32>
    %296 = vector.broadcast %294 : vector<1x256xf32> to vector<3x256xf32>
    %297 = arith.mulf %295, %296 : vector<3x256xf32>
    %298 = arith.addf %293, %297 : vector<3x256xf32>
    %c2_157 = arith.constant 2 : index
    %c32_158 = arith.constant 32 : index
    %299 = vector.load %arg6[%c2_157, %c32_158] : memref<3x384xf32, #tpu.memory_space<vmem>>, vector<1x256xf32>
    %300 = vector.broadcast %55 : vector<3x1xf32> to vector<3x256xf32>
    %301 = vector.broadcast %299 : vector<1x256xf32> to vector<3x256xf32>
    %302 = arith.mulf %300, %301 : vector<3x256xf32>
    %303 = arith.addf %298, %302 : vector<3x256xf32>
    %c0_159 = arith.constant 0 : index
    %c33_160 = arith.constant 33 : index
    %304 = vector.load %arg6[%c0_159, %c33_160] : memref<3x384xf32, #tpu.memory_space<vmem>>, vector<1x256xf32>
    %305 = vector.broadcast %21 : vector<3x1xf32> to vector<3x256xf32>
    %306 = vector.broadcast %304 : vector<1x256xf32> to vector<3x256xf32>
    %307 = arith.mulf %305, %306 : vector<3x256xf32>
    %308 = arith.addf %303, %307 : vector<3x256xf32>
    %c1_161 = arith.constant 1 : index
    %c33_162 = arith.constant 33 : index
    %309 = vector.load %arg6[%c1_161, %c33_162] : memref<3x384xf32, #tpu.memory_space<vmem>>, vector<1x256xf32>
    %310 = vector.broadcast %39 : vector<3x1xf32> to vector<3x256xf32>
    %311 = vector.broadcast %309 : vector<1x256xf32> to vector<3x256xf32>
    %312 = arith.mulf %310, %311 : vector<3x256xf32>
    %313 = arith.addf %308, %312 : vector<3x256xf32>
    %c2_163 = arith.constant 2 : index
    %c33_164 = arith.constant 33 : index
    %314 = vector.load %arg6[%c2_163, %c33_164] : memref<3x384xf32, #tpu.memory_space<vmem>>, vector<1x256xf32>
    %315 = vector.broadcast %57 : vector<3x1xf32> to vector<3x256xf32>
    %316 = vector.broadcast %314 : vector<1x256xf32> to vector<3x256xf32>
    %317 = arith.mulf %315, %316 : vector<3x256xf32>
    %318 = arith.addf %313, %317 : vector<3x256xf32>
    %c0_165 = arith.constant 0 : index
    %c34_166 = arith.constant 34 : index
    %319 = vector.load %arg6[%c0_165, %c34_166] : memref<3x384xf32, #tpu.memory_space<vmem>>, vector<1x256xf32>
    %320 = vector.broadcast %23 : vector<3x1xf32> to vector<3x256xf32>
    %321 = vector.broadcast %319 : vector<1x256xf32> to vector<3x256xf32>
    %322 = arith.mulf %320, %321 : vector<3x256xf32>
    %323 = arith.addf %318, %322 : vector<3x256xf32>
    %c1_167 = arith.constant 1 : index
    %c34_168 = arith.constant 34 : index
    %324 = vector.load %arg6[%c1_167, %c34_168] : memref<3x384xf32, #tpu.memory_space<vmem>>, vector<1x256xf32>
    %325 = vector.broadcast %41 : vector<3x1xf32> to vector<3x256xf32>
    %326 = vector.broadcast %324 : vector<1x256xf32> to vector<3x256xf32>
    %327 = arith.mulf %325, %326 : vector<3x256xf32>
    %328 = arith.addf %323, %327 : vector<3x256xf32>
    %c2_169 = arith.constant 2 : index
    %c34_170 = arith.constant 34 : index
    %329 = vector.load %arg6[%c2_169, %c34_170] : memref<3x384xf32, #tpu.memory_space<vmem>>, vector<1x256xf32>
    %330 = vector.broadcast %59 : vector<3x1xf32> to vector<3x256xf32>
    %331 = vector.broadcast %329 : vector<1x256xf32> to vector<3x256xf32>
    %332 = arith.mulf %330, %331 : vector<3x256xf32>
    %333 = arith.addf %328, %332 : vector<3x256xf32>
    %c0_171 = arith.constant 0 : index
    %c0_172 = arith.constant 0 : index
    %334 = vector.load %arg5[%c0_171, %c0_172] : memref<3x384xf32, #tpu.memory_space<vmem>>, vector<3x256xf32>
    tpu.vector_store %arg5[%c0_171, %c0_172], %333 {strides = array<i32>} : memref<3x384xf32, #tpu.memory_space<vmem>>, vector<3x256xf32>,
    %c0_173 = arith.constant 0 : index
    %c0_174 = arith.constant 0 : index
    %335 = vector.load %arg5[%c0_173, %c0_174] : memref<3x384xf32, #tpu.memory_space<vmem>>, vector<1x256xf32>
    %336 = vector.broadcast %7 : vector<3x1xf32> to vector<3x256xf32>
    %337 = vector.broadcast %335 : vector<1x256xf32> to vector<3x256xf32>
    %338 = arith.mulf %336, %337 : vector<3x256xf32>
    %339 = arith.addf %62, %338 : vector<3x256xf32>
    %c1_175 = arith.constant 1 : index
    %c0_176 = arith.constant 0 : index
    %340 = vector.load %arg5[%c1_175, %c0_176] : memref<3x384xf32, #tpu.memory_space<vmem>>, vector<1x256xf32>
    %341 = vector.broadcast %25 : vector<3x1xf32> to vector<3x256xf32>
    %342 = vector.broadcast %340 : vector<1x256xf32> to vector<3x256xf32>
    %343 = arith.mulf %341, %342 : vector<3x256xf32>
    %344 = arith.addf %339, %343 : vector<3x256xf32>
    %c2_177 = arith.constant 2 : index
    %c0_178 = arith.constant 0 : index
    %345 = vector.load %arg5[%c2_177, %c0_178] : memref<3x384xf32, #tpu.memory_space<vmem>>, vector<1x256xf32>
    %346 = vector.broadcast %43 : vector<3x1xf32> to vector<3x256xf32>
    %347 = vector.broadcast %345 : vector<1x256xf32> to vector<3x256xf32>
    %348 = arith.mulf %346, %347 : vector<3x256xf32>
    %349 = arith.addf %344, %348 : vector<3x256xf32>
    %c0_179 = arith.constant 0 : index
    %c1_180 = arith.constant 1 : index
    %350 = vector.load %arg5[%c0_179, %c1_180] : memref<3x384xf32, #tpu.memory_space<vmem>>, vector<1x256xf32>
    %351 = vector.broadcast %9 : vector<3x1xf32> to vector<3x256xf32>
    %352 = vector.broadcast %350 : vector<1x256xf32> to vector<3x256xf32>
    %353 = arith.mulf %351, %352 : vector<3x256xf32>
    %354 = arith.addf %349, %353 : vector<3x256xf32>
    %c1_181 = arith.constant 1 : index
    %c1_182 = arith.constant 1 : index
    %355 = vector.load %arg5[%c1_181, %c1_182] : memref<3x384xf32, #tpu.memory_space<vmem>>, vector<1x256xf32>
    %356 = vector.broadcast %27 : vector<3x1xf32> to vector<3x256xf32>
    %357 = vector.broadcast %355 : vector<1x256xf32> to vector<3x256xf32>
    %358 = arith.mulf %356, %357 : vector<3x256xf32>
    %359 = arith.addf %354, %358 : vector<3x256xf32>
    %c2_183 = arith.constant 2 : index
    %c1_184 = arith.constant 1 : index
    %360 = vector.load %arg5[%c2_183, %c1_184] : memref<3x384xf32, #tpu.memory_space<vmem>>, vector<1x256xf32>
    %361 = vector.broadcast %45 : vector<3x1xf32> to vector<3x256xf32>
    %362 = vector.broadcast %360 : vector<1x256xf32> to vector<3x256xf32>
    %363 = arith.mulf %361, %362 : vector<3x256xf32>
    %364 = arith.addf %359, %363 : vector<3x256xf32>
    %c0_185 = arith.constant 0 : index
    %c2_186 = arith.constant 2 : index
    %365 = vector.load %arg5[%c0_185, %c2_186] : memref<3x384xf32, #tpu.memory_space<vmem>>, vector<1x256xf32>
    %366 = vector.broadcast %11 : vector<3x1xf32> to vector<3x256xf32>
    %367 = vector.broadcast %365 : vector<1x256xf32> to vector<3x256xf32>
    %368 = arith.mulf %366, %367 : vector<3x256xf32>
    %369 = arith.addf %364, %368 : vector<3x256xf32>
    %c1_187 = arith.constant 1 : index
    %c2_188 = arith.constant 2 : index
    %370 = vector.load %arg5[%c1_187, %c2_188] : memref<3x384xf32, #tpu.memory_space<vmem>>, vector<1x256xf32>
    %371 = vector.broadcast %29 : vector<3x1xf32> to vector<3x256xf32>
    %372 = vector.broadcast %370 : vector<1x256xf32> to vector<3x256xf32>
    %373 = arith.mulf %371, %372 : vector<3x256xf32>
    %374 = arith.addf %369, %373 : vector<3x256xf32>
    %c2_189 = arith.constant 2 : index
    %c2_190 = arith.constant 2 : index
    %375 = vector.load %arg5[%c2_189, %c2_190] : memref<3x384xf32, #tpu.memory_space<vmem>>, vector<1x256xf32>
    %376 = vector.broadcast %47 : vector<3x1xf32> to vector<3x256xf32>
    %377 = vector.broadcast %375 : vector<1x256xf32> to vector<3x256xf32>
    %378 = arith.mulf %376, %377 : vector<3x256xf32>
    %379 = arith.addf %374, %378 : vector<3x256xf32>
    %c0_191 = arith.constant 0 : index
    %c16_192 = arith.constant 16 : index
    %380 = vector.load %arg5[%c0_191, %c16_192] : memref<3x384xf32, #tpu.memory_space<vmem>>, vector<1x256xf32>
    %381 = vector.broadcast %13 : vector<3x1xf32> to vector<3x256xf32>
    %382 = vector.broadcast %380 : vector<1x256xf32> to vector<3x256xf32>
    %383 = arith.mulf %381, %382 : vector<3x256xf32>
    %384 = arith.addf %379, %383 : vector<3x256xf32>
    %c1_193 = arith.constant 1 : index
    %c16_194 = arith.constant 16 : index
    %385 = vector.load %arg5[%c1_193, %c16_194] : memref<3x384xf32, #tpu.memory_space<vmem>>, vector<1x256xf32>
    %386 = vector.broadcast %31 : vector<3x1xf32> to vector<3x256xf32>
    %387 = vector.broadcast %385 : vector<1x256xf32> to vector<3x256xf32>
    %388 = arith.mulf %386, %387 : vector<3x256xf32>
    %389 = arith.addf %384, %388 : vector<3x256xf32>
    %c2_195 = arith.constant 2 : index
    %c16_196 = arith.constant 16 : index
    %390 = vector.load %arg5[%c2_195, %c16_196] : memref<3x384xf32, #tpu.memory_space<vmem>>, vector<1x256xf32>
    %391 = vector.broadcast %49 : vector<3x1xf32> to vector<3x256xf32>
    %392 = vector.broadcast %390 : vector<1x256xf32> to vector<3x256xf32>
    %393 = arith.mulf %391, %392 : vector<3x256xf32>
    %394 = arith.addf %389, %393 : vector<3x256xf32>
    %c0_197 = arith.constant 0 : index
    %c17_198 = arith.constant 17 : index
    %395 = vector.load %arg5[%c0_197, %c17_198] : memref<3x384xf32, #tpu.memory_space<vmem>>, vector<1x256xf32>
    %396 = vector.broadcast %15 : vector<3x1xf32> to vector<3x256xf32>
    %397 = vector.broadcast %395 : vector<1x256xf32> to vector<3x256xf32>
    %398 = arith.mulf %396, %397 : vector<3x256xf32>
    %399 = arith.addf %394, %398 : vector<3x256xf32>
    %c1_199 = arith.constant 1 : index
    %c17_200 = arith.constant 17 : index
    %400 = vector.load %arg5[%c1_199, %c17_200] : memref<3x384xf32, #tpu.memory_space<vmem>>, vector<1x256xf32>
    %401 = vector.broadcast %33 : vector<3x1xf32> to vector<3x256xf32>
    %402 = vector.broadcast %400 : vector<1x256xf32> to vector<3x256xf32>
    %403 = arith.mulf %401, %402 : vector<3x256xf32>
    %404 = arith.addf %399, %403 : vector<3x256xf32>
    %c2_201 = arith.constant 2 : index
    %c17_202 = arith.constant 17 : index
    %405 = vector.load %arg5[%c2_201, %c17_202] : memref<3x384xf32, #tpu.memory_space<vmem>>, vector<1x256xf32>
    %406 = vector.broadcast %51 : vector<3x1xf32> to vector<3x256xf32>
    %407 = vector.broadcast %405 : vector<1x256xf32> to vector<3x256xf32>
    %408 = arith.mulf %406, %407 : vector<3x256xf32>
    %409 = arith.addf %404, %408 : vector<3x256xf32>
    %c0_203 = arith.constant 0 : index
    %c18_204 = arith.constant 18 : index
    %410 = vector.load %arg5[%c0_203, %c18_204] : memref<3x384xf32, #tpu.memory_space<vmem>>, vector<1x256xf32>
    %411 = vector.broadcast %17 : vector<3x1xf32> to vector<3x256xf32>
    %412 = vector.broadcast %410 : vector<1x256xf32> to vector<3x256xf32>
    %413 = arith.mulf %411, %412 : vector<3x256xf32>
    %414 = arith.addf %409, %413 : vector<3x256xf32>
    %c1_205 = arith.constant 1 : index
    %c18_206 = arith.constant 18 : index
    %415 = vector.load %arg5[%c1_205, %c18_206] : memref<3x384xf32, #tpu.memory_space<vmem>>, vector<1x256xf32>
    %416 = vector.broadcast %35 : vector<3x1xf32> to vector<3x256xf32>
    %417 = vector.broadcast %415 : vector<1x256xf32> to vector<3x256xf32>
    %418 = arith.mulf %416, %417 : vector<3x256xf32>
    %419 = arith.addf %414, %418 : vector<3x256xf32>
    %c2_207 = arith.constant 2 : index
    %c18_208 = arith.constant 18 : index
    %420 = vector.load %arg5[%c2_207, %c18_208] : memref<3x384xf32, #tpu.memory_space<vmem>>, vector<1x256xf32>
    %421 = vector.broadcast %53 : vector<3x1xf32> to vector<3x256xf32>
    %422 = vector.broadcast %420 : vector<1x256xf32> to vector<3x256xf32>
    %423 = arith.mulf %421, %422 : vector<3x256xf32>
    %424 = arith.addf %419, %423 : vector<3x256xf32>
    %c0_209 = arith.constant 0 : index
    %c32_210 = arith.constant 32 : index
    %425 = vector.load %arg5[%c0_209, %c32_210] : memref<3x384xf32, #tpu.memory_space<vmem>>, vector<1x256xf32>
    %426 = vector.broadcast %19 : vector<3x1xf32> to vector<3x256xf32>
    %427 = vector.broadcast %425 : vector<1x256xf32> to vector<3x256xf32>
    %428 = arith.mulf %426, %427 : vector<3x256xf32>
    %429 = arith.addf %424, %428 : vector<3x256xf32>
    %c1_211 = arith.constant 1 : index
    %c32_212 = arith.constant 32 : index
    %430 = vector.load %arg5[%c1_211, %c32_212] : memref<3x384xf32, #tpu.memory_space<vmem>>, vector<1x256xf32>
    %431 = vector.broadcast %37 : vector<3x1xf32> to vector<3x256xf32>
    %432 = vector.broadcast %430 : vector<1x256xf32> to vector<3x256xf32>
    %433 = arith.mulf %431, %432 : vector<3x256xf32>
    %434 = arith.addf %429, %433 : vector<3x256xf32>
    %c2_213 = arith.constant 2 : index
    %c32_214 = arith.constant 32 : index
    %435 = vector.load %arg5[%c2_213, %c32_214] : memref<3x384xf32, #tpu.memory_space<vmem>>, vector<1x256xf32>
    %436 = vector.broadcast %55 : vector<3x1xf32> to vector<3x256xf32>
    %437 = vector.broadcast %435 : vector<1x256xf32> to vector<3x256xf32>
    %438 = arith.mulf %436, %437 : vector<3x256xf32>
    %439 = arith.addf %434, %438 : vector<3x256xf32>
    %c0_215 = arith.constant 0 : index
    %c33_216 = arith.constant 33 : index
    %440 = vector.load %arg5[%c0_215, %c33_216] : memref<3x384xf32, #tpu.memory_space<vmem>>, vector<1x256xf32>
    %441 = vector.broadcast %21 : vector<3x1xf32> to vector<3x256xf32>
    %442 = vector.broadcast %440 : vector<1x256xf32> to vector<3x256xf32>
    %443 = arith.mulf %441, %442 : vector<3x256xf32>
    %444 = arith.addf %439, %443 : vector<3x256xf32>
    %c1_217 = arith.constant 1 : index
    %c33_218 = arith.constant 33 : index
    %445 = vector.load %arg5[%c1_217, %c33_218] : memref<3x384xf32, #tpu.memory_space<vmem>>, vector<1x256xf32>
    %446 = vector.broadcast %39 : vector<3x1xf32> to vector<3x256xf32>
    %447 = vector.broadcast %445 : vector<1x256xf32> to vector<3x256xf32>
    %448 = arith.mulf %446, %447 : vector<3x256xf32>
    %449 = arith.addf %444, %448 : vector<3x256xf32>
    %c2_219 = arith.constant 2 : index
    %c33_220 = arith.constant 33 : index
    %450 = vector.load %arg5[%c2_219, %c33_220] : memref<3x384xf32, #tpu.memory_space<vmem>>, vector<1x256xf32>
    %451 = vector.broadcast %57 : vector<3x1xf32> to vector<3x256xf32>
    %452 = vector.broadcast %450 : vector<1x256xf32> to vector<3x256xf32>
    %453 = arith.mulf %451, %452 : vector<3x256xf32>
    %454 = arith.addf %449, %453 : vector<3x256xf32>
    %c0_221 = arith.constant 0 : index
    %c34_222 = arith.constant 34 : index
    %455 = vector.load %arg5[%c0_221, %c34_222] : memref<3x384xf32, #tpu.memory_space<vmem>>, vector<1x256xf32>
    %456 = vector.broadcast %23 : vector<3x1xf32> to vector<3x256xf32>
    %457 = vector.broadcast %455 : vector<1x256xf32> to vector<3x256xf32>
    %458 = arith.mulf %456, %457 : vector<3x256xf32>
    %459 = arith.addf %454, %458 : vector<3x256xf32>
    %c1_223 = arith.constant 1 : index
    %c34_224 = arith.constant 34 : index
    %460 = vector.load %arg5[%c1_223, %c34_224] : memref<3x384xf32, #tpu.memory_space<vmem>>, vector<1x256xf32>
    %461 = vector.broadcast %41 : vector<3x1xf32> to vector<3x256xf32>
    %462 = vector.broadcast %460 : vector<1x256xf32> to vector<3x256xf32>
    %463 = arith.mulf %461, %462 : vector<3x256xf32>
    %464 = arith.addf %459, %463 : vector<3x256xf32>
    %c2_225 = arith.constant 2 : index
    %c34_226 = arith.constant 34 : index
    %465 = vector.load %arg5[%c2_225, %c34_226] : memref<3x384xf32, #tpu.memory_space<vmem>>, vector<1x256xf32>
    %466 = vector.broadcast %59 : vector<3x1xf32> to vector<3x256xf32>
    %467 = vector.broadcast %465 : vector<1x256xf32> to vector<3x256xf32>
    %468 = arith.mulf %466, %467 : vector<3x256xf32>
    %469 = arith.addf %464, %468 : vector<3x256xf32>
    %c0_227 = arith.constant 0 : index
    %c0_228 = arith.constant 0 : index
    %c0_229 = arith.constant 0 : index
    %470 = vector.load %arg4[%c0_227, %c0_228, %c0_229] : memref<1x3x256xf32, #tpu.memory_space<vmem>>, vector<1x3x256xf32>
    %471 = vector.shape_cast %470 : vector<1x3x256xf32> to vector<3x256xf32>
    %472 = vector.shape_cast %469 : vector<3x256xf32> to vector<1x3x256xf32>
    tpu.vector_store %arg4[%c0_227, %c0_228, %c0_229], %472 {strides = array<i32>} : memref<1x3x256xf32, #tpu.memory_space<vmem>>, vector<1x3x256xf32>,
    return
  }
  func.func @transform_0(%arg0: i32) -> (i32, i32, i32) {
    %c0_i32 = arith.constant 0 : i32
    %c0_i32_0 = arith.constant 0 : i32
    %c0_i32_1 = arith.constant 0 : i32
    %c0_i32_2 = arith.constant 0 : i32
    return %c0_i32, %c0_i32_0, %c0_i32_1 : i32, i32, i32
  }
  func.func @transform_1(%arg0: i32) -> (i32, i32) {
    %c0_i32 = arith.constant 0 : i32
    %c0_i32_0 = arith.constant 0 : i32
    %c0_i32_1 = arith.constant 0 : i32
    return %c0_i32, %c0_i32_0 : i32, i32
  }
  func.func @transform_2(%arg0: i32) -> (i32, i32, i32) {
    %c0_i32 = arith.constant 0 : i32
    %c0_i32_0 = arith.constant 0 : i32
    %c0_i32_1 = arith.constant 0 : i32
    return %arg0, %c0_i32, %c0_i32_0 : i32, i32, i32
  }
  func.func @transform_3(%arg0: i32) -> (i32, i32, i32) {
    %c0_i32 = arith.constant 0 : i32
    %c0_i32_0 = arith.constant 0 : i32
    %c0_i32_1 = arith.constant 0 : i32
    return %arg0, %c0_i32, %c0_i32_0 : i32, i32, i32
  }
}

</mosaic_0001>

<llo_original>
// kernel: model_forward.1
$region0: #{model_forward.1}
  #allocation0 [shape = 'u32[]', space=smem, size = 0x4, offset = 0x4, fixed_abs, tag = 'smem constant byte address 0x4 - core index']
  #allocation1 [shape = 'u32[144,128]{1,0:T(1,128)}', space=vmem, size = 0x12000, scoped, tag = 'internal scratch']
  #allocation2 [shape = 'f32[3,384]{1,0:T(4,128)}', space=vmem, size = 0x1800, scoped, tag = 'scratch operand']
  #allocation3 [shape = 'f32[3,384]{1,0:T(4,128)}', space=vmem, size = 0x1800, scoped, tag = 'scratch operand']
  %s0 = inlined_call_operand.vmem [shape: f32[27,3,1], index: 0, kind: input, shape index: {}]
  %s1 = inlined_call_operand.vmem [shape: f32[3,1], index: 1, kind: input, shape index: {}]
  %s2 = inlined_call_operand.vmem [shape: f32[2,3,256], index: 2, kind: input, shape index: {}]
  %s3 = inlined_call_operand.vmem [shape: f32[2,3,256], index: 3, kind: output, shape index: {}]
  %s4 = sld [smem:[#allocation0]]
  $region45: #{model_forward.1} parent=0
    _
  %s6 = ssub.s32 1, %s4
  %s7 = scalar_select 0, %s6, %s4
  loop: start=0, step=1, limit=4
  $region2: #{model_forward.1} parent=0 // loop_pre_header
    _
  $region3: #{model_forward.1} parent=0 // loop_header
    %s9 = sphi 0, %s13
    %p10 = scmp.ge.s32.totalorder %s9, 4
    %s17 = sphi 0, %s17
    %s19 = sphi 0, %s17
    %s20 = sphi 0, %s19
    %s34 = sphi 0, %s20
    %s38 = sphi 0, %s38
    %s40 = sphi 0, %s38
    %s41 = sphi 0, %s40
    %s55 = sphi 0, %s41
    %s61 = sphi 0, %s63
    %s64 = sphi 0, %s61
    %s65 = sphi 0, %s64
    %s81 = sphi 0, %s65
    %s87 = sphi 0, %s89
    %s90 = sphi 0, %s87
    %s91 = sphi 0, %s90
    %s107 = sphi 0, %s91
  $region4: #{model_forward.1} parent=0 // loop_header_branch
    %12 = sbr.rel (%p10) target = $region8
  $region5: #{model_forward.1} parent=0 // loop_body
    %s14 = ssub.s32 %s9, 1
    %s15 = ssub.s32 %s9, 2
    %s16 = sadd.s32 %s9, 1
    %s18 = sadd.s32 %s17, 1
    %p21 = scmp.eq.s32.totalorder %s9, 1
    %p22 = scmp.ne.s32.totalorder %s17, %s19
    %p23 = scmp.eq.s32.totalorder %s9, 0
    %p24 = por %p22, %p23
    %p25 = scmp.ne.s32.totalorder %s17, %s19
    %p26 = scmp.eq.s32.totalorder %s14, 1
    %p27 = por %p25, %p26
    %p28 = scmp.ne.s32.totalorder %s19, %s20
    %p29 = scmp.eq.s32.totalorder %s14, 0
    %p30 = por %p28, %p29
    %p31 = scmp.ne.s32.totalorder %s19, %s20
    %p32 = scmp.eq.s32.totalorder %s15, 1
    %p33 = por %p31, %p32
    %p35 = scmp.ne.s32.totalorder %s20, %s34
    %p36 = scmp.eq.s32.totalorder %s15, 0
    %p37 = por %p35, %p36
    %s39 = sadd.s32 %s38, 1
    %p42 = scmp.eq.s32.totalorder %s9, 1
    %p43 = scmp.ne.s32.totalorder %s38, %s40
    %p44 = scmp.eq.s32.totalorder %s9, 0
    %p45 = por %p43, %p44
    %p46 = scmp.ne.s32.totalorder %s38, %s40
    %p47 = scmp.eq.s32.totalorder %s14, 1
    %p48 = por %p46, %p47
    %p49 = scmp.ne.s32.totalorder %s40, %s41
    %p50 = scmp.eq.s32.totalorder %s14, 0
    %p51 = por %p49, %p50
    %p52 = scmp.ne.s32.totalorder %s40, %s41
    %p53 = scmp.eq.s32.totalorder %s15, 1
    %p54 = por %p52, %p53
    %p56 = scmp.ne.s32.totalorder %s41, %s55
    %p57 = scmp.eq.s32.totalorder %s15, 0
    %p58 = por %p56, %p57
    %s59 = ssub.s32 %s9, %s16
    %p60 = scmp.eq.s32.totalorder %s59, 0
    %s62 = sadd.s32 %s61, 1
    %s63 = scalar_select %p60, %s61, %s62
    %p66 = pneg %p60
    %p67 = scmp.eq.s32.totalorder %s9, 1
    %p68 = por %p66, %p67
    %p69 = scmp.ne.s32.totalorder %s61, %s64
    %p70 = scmp.eq.s32.totalorder %s9, 0
    %p71 = por %p69, %p70
    %p72 = scmp.ne.s32.totalorder %s61, %s64
    %p73 = scmp.eq.s32.totalorder %s14, 1
    %p74 = por %p72, %p73
    %p75 = scmp.ne.s32.totalorder %s64, %s65
    %p76 = scmp.eq.s32.totalorder %s14, 0
    %p77 = por %p75, %p76
    %p78 = scmp.ne.s32.totalorder %s64, %s65
    %p79 = scmp.eq.s32.totalorder %s15, 1
    %p80 = por %p78, %p79
    %p82 = scmp.ne.s32.totalorder %s65, %s81
    %p83 = scmp.eq.s32.totalorder %s15, 0
    %p84 = por %p82, %p83
    %s85 = ssub.s32 %s9, %s16
    %p86 = scmp.eq.s32.totalorder %s85, 0
    %s88 = sadd.s32 %s87, 1
    %s89 = scalar_select %p86, %s87, %s88
    %p92 = pneg %p86
    %p93 = scmp.eq.s32.totalorder %s9, 1
    %p94 = por %p92, %p93
    %p95 = scmp.ne.s32.totalorder %s87, %s90
    %p96 = scmp.eq.s32.totalorder %s9, 0
    %p97 = por %p95, %p96
    %p98 = scmp.ne.s32.totalorder %s87, %s90
    %p99 = scmp.eq.s32.totalorder %s14, 1
    %p100 = por %p98, %p99
    %p101 = scmp.ne.s32.totalorder %s90, %s91
    %p102 = scmp.eq.s32.totalorder %s14, 0
    %p103 = por %p101, %p102
    %p104 = scmp.ne.s32.totalorder %s90, %s91
    %p105 = scmp.eq.s32.totalorder %s15, 1
    %p106 = por %p104, %p105
    %p108 = scmp.ne.s32.totalorder %s91, %s107
    %p109 = scmp.eq.s32.totalorder %s15, 0
    %p110 = por %p108, %p109
    %p111 = scmp.le.s32.totalorder 1, %s9
    %p112 = scmp.lt.s32.totalorder %s9, 3
    %p113 = pnand %p111, %p112
    %p114 = pneg %p113
    // Predicated region
    $region9: #{model_forward.1} parent=5 // pred_check
      _
    $region10: #{model_forward.1} parent=5 // pred_check_branch
      %116 = sbr.rel (%p113) target = $region12
    $region11: #{model_forward.1} parent=5 // pred_region
      %s117 = ssub.s32 %s9, 1
      // Predicated region
      $region13: #{model_forward.1} parent=11 // pred_check
        %p118 = pneg %p30
      $region14: #{model_forward.1} parent=11 // pred_check_branch
        %120 = sbr.rel (%p118) target = $region16
      $region15: #{model_forward.1} parent=11 // pred_region
        _
      $region16: #{model_forward.1} parent=11 // pred_fallthru
        _
      // Predicated region
      $region17: #{model_forward.1} parent=11 // pred_check
        %p121 = pneg %p51
      $region18: #{model_forward.1} parent=11 // pred_check_branch
        %123 = sbr.rel (%p121) target = $region20
      $region19: #{model_forward.1} parent=11 // pred_region
        _
      $region20: #{model_forward.1} parent=11 // pred_fallthru
        _
    $region12: #{model_forward.1} parent=5 // pred_fallthru
      _
    %p124 = scmp.lt.s32.totalorder %s9, 2
    // Predicated region
    $region21: #{model_forward.1} parent=5 // pred_check
      %p125 = pneg %p124
    $region22: #{model_forward.1} parent=5 // pred_check_branch
      %127 = sbr.rel (%p125) target = $region24
    $region23: #{model_forward.1} parent=5 // pred_region
      // Predicated region
      $region25: #{model_forward.1} parent=23 // pred_check
        %p128 = pneg %p71
      $region26: #{model_forward.1} parent=23 // pred_check_branch
        %130 = sbr.rel (%p128) target = $region28
      $region27: #{model_forward.1} parent=23 // pred_region
        %p131 = scmp.lt.s32.totalorder %s9, 1
        %s132 = scalar_select %p131, %s9, 1
        %s133 = smul.addr %s132, 2
        %s134 = smul.addr %s133, 4
        %s135 = scalar_lea.vmem %s2, %s134
      $region28: #{model_forward.1} parent=23 // pred_fallthru
        _
    $region24: #{model_forward.1} parent=5 // pred_fallthru
      _
    %p136 = scmp.le.s32.totalorder 1, %s9
    %p137 = scmp.lt.s32.totalorder %s9, 3
    %p138 = pnand %p136, %p137
    %p139 = pneg %p138
    // Predicated region
    $region29: #{model_forward.1} parent=5 // pred_check
      _
    $region30: #{model_forward.1} parent=5 // pred_check_branch
      %141 = sbr.rel (%p138) target = $region32
    $region31: #{model_forward.1} parent=5 // pred_region
      %s142 = ssub.s32 %s9, 1
      %p143 = pneg %p30
      %p144 = pneg %p27
      %p145 = pneg %p51
      %p146 = pneg %p48
      %p147 = scmp.lt.s32.totalorder %s14, 1
      %s148 = scalar_select %p147, %s14, 1
      %s149 = smul.addr %s148, 2
      %s150 = smul.addr %s149, 4
      %s151 = scalar_lea.vmem %s2, %s150
      %p152 = pneg %p77
      %p153 = pneg %p74
      %p154 = pneg %p103
      %p155 = pneg %p100
      %p156 = scmp.lt.s32.totalorder %s14, 1
      %s157 = scalar_select %p156, %s14, 1
      %s158 = smul.addr %s157, 2
      %s159 = smul.addr %s158, 4
      %s160 = scalar_lea.vmem %s3, %s159
      %p161 = scmp.lt.s32.totalorder %s14, 1
      %s162 = scalar_select %p161, %s14, 1
      %s163 = smul.addr %s162, 2
      %s164 = smul.addr %s163, 4
      %s165 = scalar_lea.vmem %s2, %s164
      %p166 = scmp.lt.s32.totalorder %s14, 1
      %s167 = scalar_select %p166, %s14, 1
      %s168 = smul.addr %s167, 2
      %s169 = smul.addr %s168, 4
      %s170 = scalar_lea.vmem %s3, %s169
      %171 = vst [vmem:[#allocation2 + $0x8] sm:$0x7] 0.0
      %172 = vst [vmem:[#allocation3 + $0x8] sm:$0x7] 0.0
      %v173 = vld [vmem:[%s165] sm:$0x77]
      %174 = vst [vmem:[#allocation2] sm:$0x77] %v173
      %v175 = vld [vmem:[%s0] sm:$0x7]
      %s176 = scalar_lea.vmem %s0, 4
      %v177 = vld [vmem:[%s176] sm:$0x7]
      %s178 = scalar_lea.vmem %s0, 8
      %v179 = vld [vmem:[%s178] sm:$0x7]
      %s180 = scalar_lea.vmem %s0, 12
      %v181 = vld [vmem:[%s180] sm:$0x7]
      %s182 = scalar_lea.vmem %s0, 16
      %v183 = vld [vmem:[%s182] sm:$0x7]
      %s184 = scalar_lea.vmem %s0, 20
      %v185 = vld [vmem:[%s184] sm:$0x7]
      %s186 = scalar_lea.vmem %s0, 24
      %v187 = vld [vmem:[%s186] sm:$0x7]
      %s188 = scalar_lea.vmem %s0, 28
      %v189 = vld [vmem:[%s188] sm:$0x7]
      %s190 = scalar_lea.vmem %s0, 32
      %v191 = vld [vmem:[%s190] sm:$0x7]
      %s192 = scalar_lea.vmem %s0, 36
      %v193 = vld [vmem:[%s192] sm:$0x7]
      %s194 = scalar_lea.vmem %s0, 40
      %v195 = vld [vmem:[%s194] sm:$0x7]
      %s196 = scalar_lea.vmem %s0, 44
      %v197 = vld [vmem:[%s196] sm:$0x7]
      %s198 = scalar_lea.vmem %s0, 48
      %v199 = vld [vmem:[%s198] sm:$0x7]
      %s200 = scalar_lea.vmem %s0, 52
      %v201 = vld [vmem:[%s200] sm:$0x7]
      %s202 = scalar_lea.vmem %s0, 56
      %v203 = vld [vmem:[%s202] sm:$0x7]
      %s204 = scalar_lea.vmem %s0, 60
      %v205 = vld [vmem:[%s204] sm:$0x7]
      %s206 = scalar_lea.vmem %s0, 64
      %v207 = vld [vmem:[%s206] sm:$0x7]
      %s208 = scalar_lea.vmem %s0, 68
      %v209 = vld [vmem:[%s208] sm:$0x7]
      %s210 = scalar_lea.vmem %s0, 72
      %v211 = vld [vmem:[%s210] sm:$0x7]
      %s212 = scalar_lea.vmem %s0, 76
      %v213 = vld [vmem:[%s212] sm:$0x7]
      %s214 = scalar_lea.vmem %s0, 80
      %v215 = vld [vmem:[%s214] sm:$0x7]
      %s216 = scalar_lea.vmem %s0, 84
      %v217 = vld [vmem:[%s216] sm:$0x7]
      %s218 = scalar_lea.vmem %s0, 88
      %v219 = vld [vmem:[%s218] sm:$0x7]
      %s220 = scalar_lea.vmem %s0, 92
      %v221 = vld [vmem:[%s220] sm:$0x7]
      %s222 = scalar_lea.vmem %s0, 96
      %v223 = vld [vmem:[%s222] sm:$0x7]
      %s224 = scalar_lea.vmem %s0, 100
      %v225 = vld [vmem:[%s224] sm:$0x7]
      %s226 = scalar_lea.vmem %s0, 104
      %v227 = vld [vmem:[%s226] sm:$0x7]
      %v228 = vld [vmem:[%s1] sm:$0x7]
      %230 = vset.pattern.permute.xlu0 0
      %231 = vperm.xlu0 %230, %v228
      %v232 = vpop.permute.xlu0 %231
      %v234 = vld [vmem:[#allocation2] ss:$4 sm:$0x3]
      %236 = vset.pattern.permute.xlu0 0
      %237 = vperm.xlu0 %236, %v175
      %v238 = vpop.permute.xlu0 %237
      %v241 = vlaneseq
      %v242 = vshrl.u32 %v241, 7
      %v243 = vsub.s32 0, %v242
      %v244 = vrot.slane %v234, %v243
      %v245 = vlaneseq
      %v246 = vshrl.u32 %v245, 7
      %v247 = vsub.s32 1, %v246
      %v248 = vrot.slane %v234, %v247
      %v251 = vmul.f32 %v238, %v244
      %v252 = vmul.f32 %v238, %v248
      %v253 = vadd.f32 %v232, %v251
      %v254 = vadd.f32 %v232, %v252
      %s255 = scalar_lea.vmem [#allocation2], 1
      %v256 = vld [vmem:[%s255] ss:$4 sm:$0x3]
      %258 = vset.pattern.permute.xlu0 0
      %259 = vperm.xlu0 %258, %v193
      %v260 = vpop.permute.xlu0 %259
      %v263 = vlaneseq
      %v264 = vshrl.u32 %v263, 7
      %v265 = vsub.s32 0, %v264
      %v266 = vrot.slane %v256, %v265
      %v267 = vlaneseq
      %v268 = vshrl.u32 %v267, 7
      %v269 = vsub.s32 1, %v268
      %v270 = vrot.slane %v256, %v269
      %v273 = vmul.f32 %v260, %v266
      %v274 = vmul.f32 %v260, %v270
      %v275 = vadd.f32 %v253, %v273
      %v276 = vadd.f32 %v254, %v274
      %s277 = scalar_lea.vmem [#allocation2], 2
      %v278 = vld [vmem:[%s277] ss:$4 sm:$0x3]
      %280 = vset.pattern.permute.xlu0 0
      %281 = vperm.xlu0 %280, %v211
      %v282 = vpop.permute.xlu0 %281
      %v285 = vlaneseq
      %v286 = vshrl.u32 %v285, 7
      %v287 = vsub.s32 0, %v286
      %v288 = vrot.slane %v278, %v287
      %v289 = vlaneseq
      %v290 = vshrl.u32 %v289, 7
      %v291 = vsub.s32 1, %v290
      %v292 = vrot.slane %v278, %v291
      %v295 = vmul.f32 %v282, %v288
      %v296 = vmul.f32 %v282, %v292
      %v297 = vadd.f32 %v275, %v295
      %v298 = vadd.f32 %v276, %v296
      %v299 = vld [vmem:[#allocation2] ss:$4 sm:$0x7]
      %301 = vset.pattern.permute.xlu0 0
      %302 = vperm.xlu0 %301, %v177
      %v303 = vpop.permute.xlu0 %302
      %v306 = vlaneseq
      %v307 = vshrl.u32 %v306, 7
      %v308 = vsub.s32 0, %v307
      %v309 = vrot.slane %v299, %v308
      %v310 = vlaneseq
      %v311 = vshrl.u32 %v310, 7
      %v312 = vsub.s32 1, %v311
      %v313 = vrot.slane %v299, %v312
      %v314 = vlaneseq
      %v315 = vshrl.u32 %v314, 7
      %v316 = vsub.s32 2, %v315
      %v317 = vrot.slane %v299, %v316
      %v321 = vmul.f32 %v303, %v309
      %v322 = vmul.f32 %v303, %v313
      %v323 = vmul.f32 %v303, %v317
      %327 = vrot.lane.b32.xlu0 %v321, 127
      %v328 = vpop.permute.xlu0 %327
      %329 = vrot.lane.b32.xlu0 %v322, 127
      %v330 = vpop.permute.xlu0 %329
      %331 = vrot.lane.b32.xlu0 %v323, 127
      %v332 = vpop.permute.xlu0 %331
      %vm333 = vcmask 1039360
      %v334 = vsel %vm333, %v328, %v330
      %v335 = vsel %vm333, %v330, %v332
      %v338 = vadd.f32 %v297, %v334
      %v339 = vadd.f32 %v298, %v335
      %v340 = vld [vmem:[%s255] ss:$4 sm:$0x7]
      %342 = vset.pattern.permute.xlu0 0
      %343 = vperm.xlu0 %342, %v195
      %v344 = vpop.permute.xlu0 %343
      %v347 = vlaneseq
      %v348 = vshrl.u32 %v347, 7
      %v349 = vsub.s32 0, %v348
      %v350 = vrot.slane %v340, %v349
      %v351 = vlaneseq
      %v352 = vshrl.u32 %v351, 7
      %v353 = vsub.s32 1, %v352
      %v354 = vrot.slane %v340, %v353
      %v355 = vlaneseq
      %v356 = vshrl.u32 %v355, 7
      %v357 = vsub.s32 2, %v356
      %v358 = vrot.slane %v340, %v357
      %v362 = vmul.f32 %v344, %v350
      %v363 = vmul.f32 %v344, %v354
      %v364 = vmul.f32 %v344, %v358
      %368 = vrot.lane.b32.xlu0 %v362, 127
      %v369 = vpop.permute.xlu0 %368
      %370 = vrot.lane.b32.xlu0 %v363, 127
      %v371 = vpop.permute.xlu0 %370
      %372 = vrot.lane.b32.xlu0 %v364, 127
      %v373 = vpop.permute.xlu0 %372
      %v374 = vsel %vm333, %v369, %v371
      %v375 = vsel %vm333, %v371, %v373
      %v378 = vadd.f32 %v338, %v374
      %v379 = vadd.f32 %v339, %v375
      %v380 = vld [vmem:[%s277] ss:$4 sm:$0x7]
      %382 = vset.pattern.permute.xlu0 0
      %383 = vperm.xlu0 %382, %v213
      %v384 = vpop.permute.xlu0 %383
      %v387 = vlaneseq
      %v388 = vshrl.u32 %v387, 7
      %v389 = vsub.s32 0, %v388
      %v390 = vrot.slane %v380, %v389
      %v391 = vlaneseq
      %v392 = vshrl.u32 %v391, 7
      %v393 = vsub.s32 1, %v392
      %v394 = vrot.slane %v380, %v393
      %v395 = vlaneseq
      %v396 = vshrl.u32 %v395, 7
      %v397 = vsub.s32 2, %v396
      %v398 = vrot.slane %v380, %v397
      %v402 = vmul.f32 %v384, %v390
      %v403 = vmul.f32 %v384, %v394
      %v404 = vmul.f32 %v384, %v398
      %408 = vrot.lane.b32.xlu0 %v402, 127
      %v409 = vpop.permute.xlu0 %408
      %410 = vrot.lane.b32.xlu0 %v403, 127
      %v411 = vpop.permute.xlu0 %410
      %412 = vrot.lane.b32.xlu0 %v404, 127
      %v413 = vpop.permute.xlu0 %412
      %v414 = vsel %vm333, %v409, %v411
      %v415 = vsel %vm333, %v411, %v413
      %v418 = vadd.f32 %v378, %v414
      %v419 = vadd.f32 %v379, %v415
      %421 = vset.pattern.permute.xlu0 0
      %422 = vperm.xlu0 %421, %v179
      %v423 = vpop.permute.xlu0 %422
      %v425 = vmul.f32 %v423, %v309
      %v426 = vmul.f32 %v423, %v313
      %v427 = vmul.f32 %v423, %v317
      %431 = vrot.lane.b32.xlu0 %v425, 126
      %v432 = vpop.permute.xlu0 %431
      %433 = vrot.lane.b32.xlu0 %v426, 126
      %v434 = vpop.permute.xlu0 %433
      %435 = vrot.lane.b32.xlu0 %v427, 126
      %v436 = vpop.permute.xlu0 %435
      %vm437 = vcmask 1031168
      %v438 = vsel %vm437, %v432, %v434
      %v439 = vsel %vm437, %v434, %v436
      %v442 = vadd.f32 %v418, %v438
      %v443 = vadd.f32 %v419, %v439
      %445 = vset.pattern.permute.xlu0 0
      %446 = vperm.xlu0 %445, %v197
      %v447 = vpop.permute.xlu0 %446
      %v449 = vmul.f32 %v447, %v350
      %v450 = vmul.f32 %v447, %v354
      %v451 = vmul.f32 %v447, %v358
      %455 = vrot.lane.b32.xlu0 %v449, 126
      %v456 = vpop.permute.xlu0 %455
      %457 = vrot.lane.b32.xlu0 %v450, 126
      %v458 = vpop.permute.xlu0 %457
      %459 = vrot.lane.b32.xlu0 %v451, 126
      %v460 = vpop.permute.xlu0 %459
      %v461 = vsel %vm437, %v456, %v458
      %v462 = vsel %vm437, %v458, %v460
      %v465 = vadd.f32 %v442, %v461
      %v466 = vadd.f32 %v443, %v462
      %468 = vset.pattern.permute.xlu0 0
      %469 = vperm.xlu0 %468, %v215
      %v470 = vpop.permute.xlu0 %469
      %v472 = vmul.f32 %v470, %v390
      %v473 = vmul.f32 %v470, %v394
      %v474 = vmul.f32 %v470, %v398
      %478 = vrot.lane.b32.xlu0 %v472, 126
      %v479 = vpop.permute.xlu0 %478
      %480 = vrot.lane.b32.xlu0 %v473, 126
      %v481 = vpop.permute.xlu0 %480
      %482 = vrot.lane.b32.xlu0 %v474, 126
      %v483 = vpop.permute.xlu0 %482
      %v484 = vsel %vm437, %v479, %v481
      %v485 = vsel %vm437, %v481, %v483
      %v488 = vadd.f32 %v465, %v484
      %v489 = vadd.f32 %v466, %v485
      %491 = vset.pattern.permute.xlu0 0
      %492 = vperm.xlu0 %491, %v181
      %v493 = vpop.permute.xlu0 %492
      %v495 = vmul.f32 %v493, %v309
      %v496 = vmul.f32 %v493, %v313
      %v497 = vmul.f32 %v493, %v317
      %501 = vrot.lane.b32.xlu0 %v495, 112
      %v502 = vpop.permute.xlu0 %501
      %503 = vrot.lane.b32.xlu0 %v496, 112
      %v504 = vpop.permute.xlu0 %503
      %505 = vrot.lane.b32.xlu0 %v497, 112
      %v506 = vpop.permute.xlu0 %505
      %vm507 = vcmask 916480
      %v508 = vsel %vm507, %v502, %v504
      %v509 = vsel %vm507, %v504, %v506
      %v512 = vadd.f32 %v488, %v508
      %v513 = vadd.f32 %v489, %v509
      %515 = vset.pattern.permute.xlu0 0
      %516 = vperm.xlu0 %515, %v199
      %v517 = vpop.permute.xlu0 %516
      %v519 = vmul.f32 %v517, %v350
      %v520 = vmul.f32 %v517, %v354
      %v521 = vmul.f32 %v517, %v358
      %525 = vrot.lane.b32.xlu0 %v519, 112
      %v526 = vpop.permute.xlu0 %525
      %527 = vrot.lane.b32.xlu0 %v520, 112
      %v528 = vpop.permute.xlu0 %527
      %529 = vrot.lane.b32.xlu0 %v521, 112
      %v530 = vpop.permute.xlu0 %529
      %v531 = vsel %vm507, %v526, %v528
      %v532 = vsel %vm507, %v528, %v530
      %v535 = vadd.f32 %v512, %v531
      %v536 = vadd.f32 %v513, %v532
      %538 = vset.pattern.permute.xlu0 0
      %539 = vperm.xlu0 %538, %v217
      %v540 = vpop.permute.xlu0 %539
      %v542 = vmul.f32 %v540, %v390
      %v543 = vmul.f32 %v540, %v394
      %v544 = vmul.f32 %v540, %v398
      %548 = vrot.lane.b32.xlu0 %v542, 112
      %v549 = vpop.permute.xlu0 %548
      %550 = vrot.lane.b32.xlu0 %v543, 112
      %v551 = vpop.permute.xlu0 %550
      %552 = vrot.lane.b32.xlu0 %v544, 112
      %v553 = vpop.permute.xlu0 %552
      %v554 = vsel %vm507, %v549, %v551
      %v555 = vsel %vm507, %v551, %v553
      %v558 = vadd.f32 %v535, %v554
      %v559 = vadd.f32 %v536, %v555
      %561 = vset.pattern.permute.xlu0 0
      %562 = vperm.xlu0 %561, %v183
      %v563 = vpop.permute.xlu0 %562
      %v565 = vmul.f32 %v563, %v309
      %v566 = vmul.f32 %v563, %v313
      %v567 = vmul.f32 %v563, %v317
      %571 = vrot.lane.b32.xlu0 %v565, 111
      %v572 = vpop.permute.xlu0 %571
      %573 = vrot.lane.b32.xlu0 %v566, 111
      %v574 = vpop.permute.xlu0 %573
      %575 = vrot.lane.b32.xlu0 %v567, 111
      %v576 = vpop.permute.xlu0 %575
      %vm577 = vcmask 908288
      %v578 = vsel %vm577, %v572, %v574
      %v579 = vsel %vm577, %v574, %v576
      %v582 = vadd.f32 %v558, %v578
      %v583 = vadd.f32 %v559, %v579
      %585 = vset.pattern.permute.xlu0 0
      %586 = vperm.xlu0 %585, %v201
      %v587 = vpop.permute.xlu0 %586
      %v589 = vmul.f32 %v587, %v350
      %v590 = vmul.f32 %v587, %v354
      %v591 = vmul.f32 %v587, %v358
      %595 = vrot.lane.b32.xlu0 %v589, 111
      %v596 = vpop.permute.xlu0 %595
      %597 = vrot.lane.b32.xlu0 %v590, 111
      %v598 = vpop.permute.xlu0 %597
      %599 = vrot.lane.b32.xlu0 %v591, 111
      %v600 = vpop.permute.xlu0 %599
      %v601 = vsel %vm577, %v596, %v598
      %v602 = vsel %vm577, %v598, %v600
      %v605 = vadd.f32 %v582, %v601
      %v606 = vadd.f32 %v583, %v602
      %608 = vset.pattern.permute.xlu0 0
      %609 = vperm.xlu0 %608, %v219
      %v610 = vpop.permute.xlu0 %609
      %v612 = vmul.f32 %v610, %v390
      %v613 = vmul.f32 %v610, %v394
      %v614 = vmul.f32 %v610, %v398
      %618 = vrot.lane.b32.xlu0 %v612, 111
      %v619 = vpop.permute.xlu0 %618
      %620 = vrot.lane.b32.xlu0 %v613, 111
      %v621 = vpop.permute.xlu0 %620
      %622 = vrot.lane.b32.xlu0 %v614, 111
      %v623 = vpop.permute.xlu0 %622
      %v624 = vsel %vm577, %v619, %v621
      %v625 = vsel %vm577, %v621, %v623
      %v628 = vadd.f32 %v605, %v624
      %v629 = vadd.f32 %v606, %v625
      %631 = vset.pattern.permute.xlu0 0
      %632 = vperm.xlu0 %631, %v185
      %v633 = vpop.permute.xlu0 %632
      %v635 = vmul.f32 %v633, %v309
      %v636 = vmul.f32 %v633, %v313
      %v637 = vmul.f32 %v633, %v317
      %641 = vrot.lane.b32.xlu0 %v635, 110
      %v642 = vpop.permute.xlu0 %641
      %643 = vrot.lane.b32.xlu0 %v636, 110
      %v644 = vpop.permute.xlu0 %643
      %645 = vrot.lane.b32.xlu0 %v637, 110
      %v646 = vpop.permute.xlu0 %645
      %vm647 = vcmask 900096
      %v648 = vsel %vm647, %v642, %v644
      %v649 = vsel %vm647, %v644, %v646
      %v652 = vadd.f32 %v628, %v648
      %v653 = vadd.f32 %v629, %v649
      %655 = vset.pattern.permute.xlu0 0
      %656 = vperm.xlu0 %655, %v203
      %v657 = vpop.permute.xlu0 %656
      %v659 = vmul.f32 %v657, %v350
      %v660 = vmul.f32 %v657, %v354
      %v661 = vmul.f32 %v657, %v358
      %665 = vrot.lane.b32.xlu0 %v659, 110
      %v666 = vpop.permute.xlu0 %665
      %667 = vrot.lane.b32.xlu0 %v660, 110
      %v668 = vpop.permute.xlu0 %667
      %669 = vrot.lane.b32.xlu0 %v661, 110
      %v670 = vpop.permute.xlu0 %669
      %v671 = vsel %vm647, %v666, %v668
      %v672 = vsel %vm647, %v668, %v670
      %v675 = vadd.f32 %v652, %v671
      %v676 = vadd.f32 %v653, %v672
      %678 = vset.pattern.permute.xlu0 0
      %679 = vperm.xlu0 %678, %v221
      %v680 = vpop.permute.xlu0 %679
      %v682 = vmul.f32 %v680, %v390
      %v683 = vmul.f32 %v680, %v394
      %v684 = vmul.f32 %v680, %v398
      %688 = vrot.lane.b32.xlu0 %v682, 110
      %v689 = vpop.permute.xlu0 %688
      %690 = vrot.lane.b32.xlu0 %v683, 110
      %v691 = vpop.permute.xlu0 %690
      %692 = vrot.lane.b32.xlu0 %v684, 110
      %v693 = vpop.permute.xlu0 %692
      %v694 = vsel %vm647, %v689, %v691
      %v695 = vsel %vm647, %v691, %v693
      %v698 = vadd.f32 %v675, %v694
      %v699 = vadd.f32 %v676, %v695
      %701 = vset.pattern.permute.xlu0 0
      %702 = vperm.xlu0 %701, %v187
      %v703 = vpop.permute.xlu0 %702
      %v705 = vmul.f32 %v703, %v309
      %v706 = vmul.f32 %v703, %v313
      %v707 = vmul.f32 %v703, %v317
      %711 = vrot.lane.b32.xlu0 %v705, 96
      %v712 = vpop.permute.xlu0 %711
      %713 = vrot.lane.b32.xlu0 %v706, 96
      %v714 = vpop.permute.xlu0 %713
      %715 = vrot.lane.b32.xlu0 %v707, 96
      %v716 = vpop.permute.xlu0 %715
      %vm717 = vcmask 785408
      %v718 = vsel %vm717, %v712, %v714
      %v719 = vsel %vm717, %v714, %v716
      %v722 = vadd.f32 %v698, %v718
      %v723 = vadd.f32 %v699, %v719
      %725 = vset.pattern.permute.xlu0 0
      %726 = vperm.xlu0 %725, %v205
      %v727 = vpop.permute.xlu0 %726
      %v729 = vmul.f32 %v727, %v350
      %v730 = vmul.f32 %v727, %v354
      %v731 = vmul.f32 %v727, %v358
      %735 = vrot.lane.b32.xlu0 %v729, 96
      %v736 = vpop.permute.xlu0 %735
      %737 = vrot.lane.b32.xlu0 %v730, 96
      %v738 = vpop.permute.xlu0 %737
      %739 = vrot.lane.b32.xlu0 %v731, 96
      %v740 = vpop.permute.xlu0 %739
      %v741 = vsel %vm717, %v736, %v738
      %v742 = vsel %vm717, %v738, %v740
      %v745 = vadd.f32 %v722, %v741
      %v746 = vadd.f32 %v723, %v742
      %748 = vset.pattern.permute.xlu0 0
      %749 = vperm.xlu0 %748, %v223
      %v750 = vpop.permute.xlu0 %749
      %v752 = vmul.f32 %v750, %v390
      %v753 = vmul.f32 %v750, %v394
      %v754 = vmul.f32 %v750, %v398
      %758 = vrot.lane.b32.xlu0 %v752, 96
      %v759 = vpop.permute.xlu0 %758
      %760 = vrot.lane.b32.xlu0 %v753, 96
      %v761 = vpop.permute.xlu0 %760
      %762 = vrot.lane.b32.xlu0 %v754, 96
      %v763 = vpop.permute.xlu0 %762
      %v764 = vsel %vm717, %v759, %v761
      %v765 = vsel %vm717, %v761, %v763
      %v768 = vadd.f32 %v745, %v764
      %v769 = vadd.f32 %v746, %v765
      %771 = vset.pattern.permute.xlu0 0
      %772 = vperm.xlu0 %771, %v189
      %v773 = vpop.permute.xlu0 %772
      %v775 = vmul.f32 %v773, %v309
      %v776 = vmul.f32 %v773, %v313
      %v777 = vmul.f32 %v773, %v317
      %781 = vrot.lane.b32.xlu0 %v775, 95
      %v782 = vpop.permute.xlu0 %781
      %783 = vrot.lane.b32.xlu0 %v776, 95
      %v784 = vpop.permute.xlu0 %783
      %785 = vrot.lane.b32.xlu0 %v777, 95
      %v786 = vpop.permute.xlu0 %785
      %vm787 = vcmask 777216
      %v788 = vsel %vm787, %v782, %v784
      %v789 = vsel %vm787, %v784, %v786
      %v792 = vadd.f32 %v768, %v788
      %v793 = vadd.f32 %v769, %v789
      %795 = vset.pattern.permute.xlu0 0
      %796 = vperm.xlu0 %795, %v207
      %v797 = vpop.permute.xlu0 %796
      %v799 = vmul.f32 %v797, %v350
      %v800 = vmul.f32 %v797, %v354
      %v801 = vmul.f32 %v797, %v358
      %805 = vrot.lane.b32.xlu0 %v799, 95
      %v806 = vpop.permute.xlu0 %805
      %807 = vrot.lane.b32.xlu0 %v800, 95
      %v808 = vpop.permute.xlu0 %807
      %809 = vrot.lane.b32.xlu0 %v801, 95
      %v810 = vpop.permute.xlu0 %809
      %v811 = vsel %vm787, %v806, %v808
      %v812 = vsel %vm787, %v808, %v810
      %v815 = vadd.f32 %v792, %v811
      %v816 = vadd.f32 %v793, %v812
      %818 = vset.pattern.permute.xlu0 0
      %819 = vperm.xlu0 %818, %v225
      %v820 = vpop.permute.xlu0 %819
      %v822 = vmul.f32 %v820, %v390
      %v823 = vmul.f32 %v820, %v394
      %v824 = vmul.f32 %v820, %v398
      %828 = vrot.lane.b32.xlu0 %v822, 95
      %v829 = vpop.permute.xlu0 %828
      %830 = vrot.lane.b32.xlu0 %v823, 95
      %v831 = vpop.permute.xlu0 %830
      %832 = vrot.lane.b32.xlu0 %v824, 95
      %v833 = vpop.permute.xlu0 %832
      %v834 = vsel %vm787, %v829, %v831
      %v835 = vsel %vm787, %v831, %v833
      %v838 = vadd.f32 %v815, %v834
      %v839 = vadd.f32 %v816, %v835
      %841 = vset.pattern.permute.xlu0 0
      %842 = vperm.xlu0 %841, %v191
      %v843 = vpop.permute.xlu0 %842
      %v845 = vmul.f32 %v843, %v309
      %v846 = vmul.f32 %v843, %v313
      %v847 = vmul.f32 %v843, %v317
      %851 = vrot.lane.b32.xlu0 %v845, 94
      %v852 = vpop.permute.xlu0 %851
      %853 = vrot.lane.b32.xlu0 %v846, 94
      %v854 = vpop.permute.xlu0 %853
      %855 = vrot.lane.b32.xlu0 %v847, 94
      %v856 = vpop.permute.xlu0 %855
      %vm857 = vcmask 769024
      %v858 = vsel %vm857, %v852, %v854
      %v859 = vsel %vm857, %v854, %v856
      %v862 = vadd.f32 %v838, %v858
      %v863 = vadd.f32 %v839, %v859
      %865 = vset.pattern.permute.xlu0 0
      %866 = vperm.xlu0 %865, %v209
      %v867 = vpop.permute.xlu0 %866
      %v869 = vmul.f32 %v867, %v350
      %v870 = vmul.f32 %v867, %v354
      %v871 = vmul.f32 %v867, %v358
      %875 = vrot.lane.b32.xlu0 %v869, 94
      %v876 = vpop.permute.xlu0 %875
      %877 = vrot.lane.b32.xlu0 %v870, 94
      %v878 = vpop.permute.xlu0 %877
      %879 = vrot.lane.b32.xlu0 %v871, 94
      %v880 = vpop.permute.xlu0 %879
      %v881 = vsel %vm857, %v876, %v878
      %v882 = vsel %vm857, %v878, %v880
      %v885 = vadd.f32 %v862, %v881
      %v886 = vadd.f32 %v863, %v882
      %888 = vset.pattern.permute.xlu0 0
      %889 = vperm.xlu0 %888, %v227
      %v890 = vpop.permute.xlu0 %889
      %v892 = vmul.f32 %v890, %v390
      %v893 = vmul.f32 %v890, %v394
      %v894 = vmul.f32 %v890, %v398
      %898 = vrot.lane.b32.xlu0 %v892, 94
      %v899 = vpop.permute.xlu0 %898
      %900 = vrot.lane.b32.xlu0 %v893, 94
      %v901 = vpop.permute.xlu0 %900
      %902 = vrot.lane.b32.xlu0 %v894, 94
      %v903 = vpop.permute.xlu0 %902
      %v904 = vsel %vm857, %v899, %v901
      %v905 = vsel %vm857, %v901, %v903
      %v908 = vadd.f32 %v885, %v904
      %v909 = vadd.f32 %v886, %v905
      %v912 = vcombine.low %v908, %v909
      %914 = vst [vmem:[#allocation3] sm:$0x77] %v912
      %v915 = vld [vmem:[#allocation3] ss:$4 sm:$0x3]
      %v917 = vlaneseq
      %v918 = vshrl.u32 %v917, 7
      %v919 = vsub.s32 0, %v918
      %v920 = vrot.slane %v915, %v919
      %v921 = vlaneseq
      %v922 = vshrl.u32 %v921, 7
      %v923 = vsub.s32 1, %v922
      %v924 = vrot.slane %v915, %v923
      %v927 = vmul.f32 %v238, %v920
      %v928 = vmul.f32 %v238, %v924
      %v929 = vadd.f32 %v232, %v927
      %v930 = vadd.f32 %v232, %v928
      %s931 = scalar_lea.vmem [#allocation3], 1
      %v932 = vld [vmem:[%s931] ss:$4 sm:$0x3]
      %v934 = vlaneseq
      %v935 = vshrl.u32 %v934, 7
      %v936 = vsub.s32 0, %v935
      %v937 = vrot.slane %v932, %v936
      %v938 = vlaneseq
      %v939 = vshrl.u32 %v938, 7
      %v940 = vsub.s32 1, %v939
      %v941 = vrot.slane %v932, %v940
      %v944 = vmul.f32 %v260, %v937
      %v945 = vmul.f32 %v260, %v941
      %v946 = vadd.f32 %v929, %v944
      %v947 = vadd.f32 %v930, %v945
      %s948 = scalar_lea.vmem [#allocation3], 2
      %v949 = vld [vmem:[%s948] ss:$4 sm:$0x3]
      %v951 = vlaneseq
      %v952 = vshrl.u32 %v951, 7
      %v953 = vsub.s32 0, %v952
      %v954 = vrot.slane %v949, %v953
      %v955 = vlaneseq
      %v956 = vshrl.u32 %v955, 7
      %v957 = vsub.s32 1, %v956
      %v958 = vrot.slane %v949, %v957
      %v961 = vmul.f32 %v282, %v954
      %v962 = vmul.f32 %v282, %v958
      %v963 = vadd.f32 %v946, %v961
      %v964 = vadd.f32 %v947, %v962
      %v965 = vld [vmem:[#allocation3] ss:$4 sm:$0x7]
      %v967 = vlaneseq
      %v968 = vshrl.u32 %v967, 7
      %v969 = vsub.s32 0, %v968
      %v970 = vrot.slane %v965, %v969
      %v971 = vlaneseq
      %v972 = vshrl.u32 %v971, 7
      %v973 = vsub.s32 1, %v972
      %v974 = vrot.slane %v965, %v973
      %v975 = vlaneseq
      %v976 = vshrl.u32 %v975, 7
      %v977 = vsub.s32 2, %v976
      %v978 = vrot.slane %v965, %v977
      %v982 = vmul.f32 %v303, %v970
      %v983 = vmul.f32 %v303, %v974
      %v984 = vmul.f32 %v303, %v978
      %988 = vrot.lane.b32.xlu0 %v982, 127
      %v989 = vpop.permute.xlu0 %988
      %990 = vrot.lane.b32.xlu0 %v983, 127
      %v991 = vpop.permute.xlu0 %990
      %992 = vrot.lane.b32.xlu0 %v984, 127
      %v993 = vpop.permute.xlu0 %992
      %v994 = vsel %vm333, %v989, %v991
      %v995 = vsel %vm333, %v991, %v993
      %v998 = vadd.f32 %v963, %v994
      %v999 = vadd.f32 %v964, %v995
      %v1000 = vld [vmem:[%s931] ss:$4 sm:$0x7]
      %v1002 = vlaneseq
      %v1003 = vshrl.u32 %v1002, 7
      %v1004 = vsub.s32 0, %v1003
      %v1005 = vrot.slane %v1000, %v1004
      %v1006 = vlaneseq
      %v1007 = vshrl.u32 %v1006, 7
      %v1008 = vsub.s32 1, %v1007
      %v1009 = vrot.slane %v1000, %v1008
      %v1010 = vlaneseq
      %v1011 = vshrl.u32 %v1010, 7
      %v1012 = vsub.s32 2, %v1011
      %v1013 = vrot.slane %v1000, %v1012
      %v1017 = vmul.f32 %v344, %v1005
      %v1018 = vmul.f32 %v344, %v1009
      %v1019 = vmul.f32 %v344, %v1013
      %1023 = vrot.lane.b32.xlu0 %v1017, 127
      %v1024 = vpop.permute.xlu0 %1023
      %1025 = vrot.lane.b32.xlu0 %v1018, 127
      %v1026 = vpop.permute.xlu0 %1025
      %1027 = vrot.lane.b32.xlu0 %v1019, 127
      %v1028 = vpop.permute.xlu0 %1027
      %v1029 = vsel %vm333, %v1024, %v1026
      %v1030 = vsel %vm333, %v1026, %v1028
      %v1033 = vadd.f32 %v998, %v1029
      %v1034 = vadd.f32 %v999, %v1030
      %v1035 = vld [vmem:[%s948] ss:$4 sm:$0x7]
      %v1037 = vlaneseq
      %v1038 = vshrl.u32 %v1037, 7
      %v1039 = vsub.s32 0, %v1038
      %v1040 = vrot.slane %v1035, %v1039
      %v1041 = vlaneseq
      %v1042 = vshrl.u32 %v1041, 7
      %v1043 = vsub.s32 1, %v1042
      %v1044 = vrot.slane %v1035, %v1043
      %v1045 = vlaneseq
      %v1046 = vshrl.u32 %v1045, 7
      %v1047 = vsub.s32 2, %v1046
      %v1048 = vrot.slane %v1035, %v1047
      %v1052 = vmul.f32 %v384, %v1040
      %v1053 = vmul.f32 %v384, %v1044
      %v1054 = vmul.f32 %v384, %v1048
      %1058 = vrot.lane.b32.xlu0 %v1052, 127
      %v1059 = vpop.permute.xlu0 %1058
      %1060 = vrot.lane.b32.xlu0 %v1053, 127
      %v1061 = vpop.permute.xlu0 %1060
      %1062 = vrot.lane.b32.xlu0 %v1054, 127
      %v1063 = vpop.permute.xlu0 %1062
      %v1064 = vsel %vm333, %v1059, %v1061
      %v1065 = vsel %vm333, %v1061, %v1063
      %v1068 = vadd.f32 %v1033, %v1064
      %v1069 = vadd.f32 %v1034, %v1065
      %v1070 = vmul.f32 %v423, %v970
      %v1071 = vmul.f32 %v423, %v974
      %v1072 = vmul.f32 %v423, %v978
      %1076 = vrot.lane.b32.xlu0 %v1070, 126
      %v1077 = vpop.permute.xlu0 %1076
      %1078 = vrot.lane.b32.xlu0 %v1071, 126
      %v1079 = vpop.permute.xlu0 %1078
      %1080 = vrot.lane.b32.xlu0 %v1072, 126
      %v1081 = vpop.permute.xlu0 %1080
      %v1082 = vsel %vm437, %v1077, %v1079
      %v1083 = vsel %vm437, %v1079, %v1081
      %v1086 = vadd.f32 %v1068, %v1082
      %v1087 = vadd.f32 %v1069, %v1083
      %v1088 = vmul.f32 %v447, %v1005
      %v1089 = vmul.f32 %v447, %v1009
      %v1090 = vmul.f32 %v447, %v1013
      %1094 = vrot.lane.b32.xlu0 %v1088, 126
      %v1095 = vpop.permute.xlu0 %1094
      %1096 = vrot.lane.b32.xlu0 %v1089, 126
      %v1097 = vpop.permute.xlu0 %1096
      %1098 = vrot.lane.b32.xlu0 %v1090, 126
      %v1099 = vpop.permute.xlu0 %1098
      %v1100 = vsel %vm437, %v1095, %v1097
      %v1101 = vsel %vm437, %v1097, %v1099
      %v1104 = vadd.f32 %v1086, %v1100
      %v1105 = vadd.f32 %v1087, %v1101
      %v1106 = vmul.f32 %v470, %v1040
      %v1107 = vmul.f32 %v470, %v1044
      %v1108 = vmul.f32 %v470, %v1048
      %1112 = vrot.lane.b32.xlu0 %v1106, 126
      %v1113 = vpop.permute.xlu0 %1112
      %1114 = vrot.lane.b32.xlu0 %v1107, 126
      %v1115 = vpop.permute.xlu0 %1114
      %1116 = vrot.lane.b32.xlu0 %v1108, 126
      %v1117 = vpop.permute.xlu0 %1116
      %v1118 = vsel %vm437, %v1113, %v1115
      %v1119 = vsel %vm437, %v1115, %v1117
      %v1122 = vadd.f32 %v1104, %v1118
      %v1123 = vadd.f32 %v1105, %v1119
      %v1124 = vmul.f32 %v493, %v970
      %v1125 = vmul.f32 %v493, %v974
      %v1126 = vmul.f32 %v493, %v978
      %1130 = vrot.lane.b32.xlu0 %v1124, 112
      %v1131 = vpop.permute.xlu0 %1130
      %1132 = vrot.lane.b32.xlu0 %v1125, 112
      %v1133 = vpop.permute.xlu0 %1132
      %1134 = vrot.lane.b32.xlu0 %v1126, 112
      %v1135 = vpop.permute.xlu0 %1134
      %v1136 = vsel %vm507, %v1131, %v1133
      %v1137 = vsel %vm507, %v1133, %v1135
      %v1140 = vadd.f32 %v1122, %v1136
      %v1141 = vadd.f32 %v1123, %v1137
      %v1142 = vmul.f32 %v517, %v1005
      %v1143 = vmul.f32 %v517, %v1009
      %v1144 = vmul.f32 %v517, %v1013
      %1148 = vrot.lane.b32.xlu0 %v1142, 112
      %v1149 = vpop.permute.xlu0 %1148
      %1150 = vrot.lane.b32.xlu0 %v1143, 112
      %v1151 = vpop.permute.xlu0 %1150
      %1152 = vrot.lane.b32.xlu0 %v1144, 112
      %v1153 = vpop.permute.xlu0 %1152
      %v1154 = vsel %vm507, %v1149, %v1151
      %v1155 = vsel %vm507, %v1151, %v1153
      %v1158 = vadd.f32 %v1140, %v1154
      %v1159 = vadd.f32 %v1141, %v1155
      %v1160 = vmul.f32 %v540, %v1040
      %v1161 = vmul.f32 %v540, %v1044
      %v1162 = vmul.f32 %v540, %v1048
      %1166 = vrot.lane.b32.xlu0 %v1160, 112
      %v1167 = vpop.permute.xlu0 %1166
      %1168 = vrot.lane.b32.xlu0 %v1161, 112
      %v1169 = vpop.permute.xlu0 %1168
      %1170 = vrot.lane.b32.xlu0 %v1162, 112
      %v1171 = vpop.permute.xlu0 %1170
      %v1172 = vsel %vm507, %v1167, %v1169
      %v1173 = vsel %vm507, %v1169, %v1171
      %v1176 = vadd.f32 %v1158, %v1172
      %v1177 = vadd.f32 %v1159, %v1173
      %v1178 = vmul.f32 %v563, %v970
      %v1179 = vmul.f32 %v563, %v974
      %v1180 = vmul.f32 %v563, %v978
      %1184 = vrot.lane.b32.xlu0 %v1178, 111
      %v1185 = vpop.permute.xlu0 %1184
      %1186 = vrot.lane.b32.xlu0 %v1179, 111
      %v1187 = vpop.permute.xlu0 %1186
      %1188 = vrot.lane.b32.xlu0 %v1180, 111
      %v1189 = vpop.permute.xlu0 %1188
      %v1190 = vsel %vm577, %v1185, %v1187
      %v1191 = vsel %vm577, %v1187, %v1189
      %v1194 = vadd.f32 %v1176, %v1190
      %v1195 = vadd.f32 %v1177, %v1191
      %v1196 = vmul.f32 %v587, %v1005
      %v1197 = vmul.f32 %v587, %v1009
      %v1198 = vmul.f32 %v587, %v1013
      %1202 = vrot.lane.b32.xlu0 %v1196, 111
      %v1203 = vpop.permute.xlu0 %1202
      %1204 = vrot.lane.b32.xlu0 %v1197, 111
      %v1205 = vpop.permute.xlu0 %1204
      %1206 = vrot.lane.b32.xlu0 %v1198, 111
      %v1207 = vpop.permute.xlu0 %1206
      %v1208 = vsel %vm577, %v1203, %v1205
      %v1209 = vsel %vm577, %v1205, %v1207
      %v1212 = vadd.f32 %v1194, %v1208
      %v1213 = vadd.f32 %v1195, %v1209
      %v1214 = vmul.f32 %v610, %v1040
      %v1215 = vmul.f32 %v610, %v1044
      %v1216 = vmul.f32 %v610, %v1048
      %1220 = vrot.lane.b32.xlu0 %v1214, 111
      %v1221 = vpop.permute.xlu0 %1220
      %1222 = vrot.lane.b32.xlu0 %v1215, 111
      %v1223 = vpop.permute.xlu0 %1222
      %1224 = vrot.lane.b32.xlu0 %v1216, 111
      %v1225 = vpop.permute.xlu0 %1224
      %v1226 = vsel %vm577, %v1221, %v1223
      %v1227 = vsel %vm577, %v1223, %v1225
      %v1230 = vadd.f32 %v1212, %v1226
      %v1231 = vadd.f32 %v1213, %v1227
      %v1232 = vmul.f32 %v633, %v970
      %v1233 = vmul.f32 %v633, %v974
      %v1234 = vmul.f32 %v633, %v978
      %1238 = vrot.lane.b32.xlu0 %v1232, 110
      %v1239 = vpop.permute.xlu0 %1238
      %1240 = vrot.lane.b32.xlu0 %v1233, 110
      %v1241 = vpop.permute.xlu0 %1240
      %1242 = vrot.lane.b32.xlu0 %v1234, 110
      %v1243 = vpop.permute.xlu0 %1242
      %v1244 = vsel %vm647, %v1239, %v1241
      %v1245 = vsel %vm647, %v1241, %v1243
      %v1248 = vadd.f32 %v1230, %v1244
      %v1249 = vadd.f32 %v1231, %v1245
      %v1250 = vmul.f32 %v657, %v1005
      %v1251 = vmul.f32 %v657, %v1009
      %v1252 = vmul.f32 %v657, %v1013
      %1256 = vrot.lane.b32.xlu0 %v1250, 110
      %v1257 = vpop.permute.xlu0 %1256
      %1258 = vrot.lane.b32.xlu0 %v1251, 110
      %v1259 = vpop.permute.xlu0 %1258
      %1260 = vrot.lane.b32.xlu0 %v1252, 110
      %v1261 = vpop.permute.xlu0 %1260
      %v1262 = vsel %vm647, %v1257, %v1259
      %v1263 = vsel %vm647, %v1259, %v1261
      %v1266 = vadd.f32 %v1248, %v1262
      %v1267 = vadd.f32 %v1249, %v1263
      %v1268 = vmul.f32 %v680, %v1040
      %v1269 = vmul.f32 %v680, %v1044
      %v1270 = vmul.f32 %v680, %v1048
      %1274 = vrot.lane.b32.xlu0 %v1268, 110
      %v1275 = vpop.permute.xlu0 %1274
      %1276 = vrot.lane.b32.xlu0 %v1269, 110
      %v1277 = vpop.permute.xlu0 %1276
      %1278 = vrot.lane.b32.xlu0 %v1270, 110
      %v1279 = vpop.permute.xlu0 %1278
      %v1280 = vsel %vm647, %v1275, %v1277
      %v1281 = vsel %vm647, %v1277, %v1279
      %v1284 = vadd.f32 %v1266, %v1280
      %v1285 = vadd.f32 %v1267, %v1281
      %v1286 = vmul.f32 %v703, %v970
      %v1287 = vmul.f32 %v703, %v974
      %v1288 = vmul.f32 %v703, %v978
      %1292 = vrot.lane.b32.xlu0 %v1286, 96
      %v1293 = vpop.permute.xlu0 %1292
      %1294 = vrot.lane.b32.xlu0 %v1287, 96
      %v1295 = vpop.permute.xlu0 %1294
      %1296 = vrot.lane.b32.xlu0 %v1288, 96
      %v1297 = vpop.permute.xlu0 %1296
      %v1298 = vsel %vm717, %v1293, %v1295
      %v1299 = vsel %vm717, %v1295, %v1297
      %v1302 = vadd.f32 %v1284, %v1298
      %v1303 = vadd.f32 %v1285, %v1299
      %v1304 = vmul.f32 %v727, %v1005
      %v1305 = vmul.f32 %v727, %v1009
      %v1306 = vmul.f32 %v727, %v1013
      %1310 = vrot.lane.b32.xlu0 %v1304, 96
      %v1311 = vpop.permute.xlu0 %1310
      %1312 = vrot.lane.b32.xlu0 %v1305, 96
      %v1313 = vpop.permute.xlu0 %1312
      %1314 = vrot.lane.b32.xlu0 %v1306, 96
      %v1315 = vpop.permute.xlu0 %1314
      %v1316 = vsel %vm717, %v1311, %v1313
      %v1317 = vsel %vm717, %v1313, %v1315
      %v1320 = vadd.f32 %v1302, %v1316
      %v1321 = vadd.f32 %v1303, %v1317
      %v1322 = vmul.f32 %v750, %v1040
      %v1323 = vmul.f32 %v750, %v1044
      %v1324 = vmul.f32 %v750, %v1048
      %1328 = vrot.lane.b32.xlu0 %v1322, 96
      %v1329 = vpop.permute.xlu0 %1328
      %1330 = vrot.lane.b32.xlu0 %v1323, 96
      %v1331 = vpop.permute.xlu0 %1330
      %1332 = vrot.lane.b32.xlu0 %v1324, 96
      %v1333 = vpop.permute.xlu0 %1332
      %v1334 = vsel %vm717, %v1329, %v1331
      %v1335 = vsel %vm717, %v1331, %v1333
      %v1338 = vadd.f32 %v1320, %v1334
      %v1339 = vadd.f32 %v1321, %v1335
      %v1340 = vmul.f32 %v773, %v970
      %v1341 = vmul.f32 %v773, %v974
      %v1342 = vmul.f32 %v773, %v978
      %1346 = vrot.lane.b32.xlu0 %v1340, 95
      %v1347 = vpop.permute.xlu0 %1346
      %1348 = vrot.lane.b32.xlu0 %v1341, 95
      %v1349 = vpop.permute.xlu0 %1348
      %1350 = vrot.lane.b32.xlu0 %v1342, 95
      %v1351 = vpop.permute.xlu0 %1350
      %v1352 = vsel %vm787, %v1347, %v1349
      %v1353 = vsel %vm787, %v1349, %v1351
      %v1356 = vadd.f32 %v1338, %v1352
      %v1357 = vadd.f32 %v1339, %v1353
      %v1358 = vmul.f32 %v797, %v1005
      %v1359 = vmul.f32 %v797, %v1009
      %v1360 = vmul.f32 %v797, %v1013
      %1364 = vrot.lane.b32.xlu0 %v1358, 95
      %v1365 = vpop.permute.xlu0 %1364
      %1366 = vrot.lane.b32.xlu0 %v1359, 95
      %v1367 = vpop.permute.xlu0 %1366
      %1368 = vrot.lane.b32.xlu0 %v1360, 95
      %v1369 = vpop.permute.xlu0 %1368
      %v1370 = vsel %vm787, %v1365, %v1367
      %v1371 = vsel %vm787, %v1367, %v1369
      %v1374 = vadd.f32 %v1356, %v1370
      %v1375 = vadd.f32 %v1357, %v1371
      %v1376 = vmul.f32 %v820, %v1040
      %v1377 = vmul.f32 %v820, %v1044
      %v1378 = vmul.f32 %v820, %v1048
      %1382 = vrot.lane.b32.xlu0 %v1376, 95
      %v1383 = vpop.permute.xlu0 %1382
      %1384 = vrot.lane.b32.xlu0 %v1377, 95
      %v1385 = vpop.permute.xlu0 %1384
      %1386 = vrot.lane.b32.xlu0 %v1378, 95
      %v1387 = vpop.permute.xlu0 %1386
      %v1388 = vsel %vm787, %v1383, %v1385
      %v1389 = vsel %vm787, %v1385, %v1387
      %v1392 = vadd.f32 %v1374, %v1388
      %v1393 = vadd.f32 %v1375, %v1389
      %v1394 = vmul.f32 %v843, %v970
      %v1395 = vmul.f32 %v843, %v974
      %v1396 = vmul.f32 %v843, %v978
      %1400 = vrot.lane.b32.xlu0 %v1394, 94
      %v1401 = vpop.permute.xlu0 %1400
      %1402 = vrot.lane.b32.xlu0 %v1395, 94
      %v1403 = vpop.permute.xlu0 %1402
      %1404 = vrot.lane.b32.xlu0 %v1396, 94
      %v1405 = vpop.permute.xlu0 %1404
      %v1406 = vsel %vm857, %v1401, %v1403
      %v1407 = vsel %vm857, %v1403, %v1405
      %v1410 = vadd.f32 %v1392, %v1406
      %v1411 = vadd.f32 %v1393, %v1407
      %v1412 = vmul.f32 %v867, %v1005
      %v1413 = vmul.f32 %v867, %v1009
      %v1414 = vmul.f32 %v867, %v1013
      %1418 = vrot.lane.b32.xlu0 %v1412, 94
      %v1419 = vpop.permute.xlu0 %1418
      %1420 = vrot.lane.b32.xlu0 %v1413, 94
      %v1421 = vpop.permute.xlu0 %1420
      %1422 = vrot.lane.b32.xlu0 %v1414, 94
      %v1423 = vpop.permute.xlu0 %1422
      %v1424 = vsel %vm857, %v1419, %v1421
      %v1425 = vsel %vm857, %v1421, %v1423
      %v1428 = vadd.f32 %v1410, %v1424
      %v1429 = vadd.f32 %v1411, %v1425
      %v1430 = vmul.f32 %v890, %v1040
      %v1431 = vmul.f32 %v890, %v1044
      %v1432 = vmul.f32 %v890, %v1048
      %1436 = vrot.lane.b32.xlu0 %v1430, 94
      %v1437 = vpop.permute.xlu0 %1436
      %1438 = vrot.lane.b32.xlu0 %v1431, 94
      %v1439 = vpop.permute.xlu0 %1438
      %1440 = vrot.lane.b32.xlu0 %v1432, 94
      %v1441 = vpop.permute.xlu0 %1440
      %v1442 = vsel %vm857, %v1437, %v1439
      %v1443 = vsel %vm857, %v1439, %v1441
      %v1446 = vadd.f32 %v1428, %v1442
      %v1447 = vadd.f32 %v1429, %v1443
      %v1450 = vcombine.low %v1446, %v1447
      %1452 = vst [vmem:[#allocation2] sm:$0x77] %v1450
      %v1453 = vld [vmem:[#allocation2] ss:$4 sm:$0x3]
      %v1455 = vlaneseq
      %v1456 = vshrl.u32 %v1455, 7
      %v1457 = vsub.s32 0, %v1456
      %v1458 = vrot.slane %v1453, %v1457
      %v1459 = vlaneseq
      %v1460 = vshrl.u32 %v1459, 7
      %v1461 = vsub.s32 1, %v1460
      %v1462 = vrot.slane %v1453, %v1461
      %v1465 = vmul.f32 %v238, %v1458
      %v1466 = vmul.f32 %v238, %v1462
      %v1467 = vadd.f32 %v232, %v1465
      %v1468 = vadd.f32 %v232, %v1466
      %v1469 = vld [vmem:[%s255] ss:$4 sm:$0x3]
      %v1471 = vlaneseq
      %v1472 = vshrl.u32 %v1471, 7
      %v1473 = vsub.s32 0, %v1472
      %v1474 = vrot.slane %v1469, %v1473
      %v1475 = vlaneseq
      %v1476 = vshrl.u32 %v1475, 7
      %v1477 = vsub.s32 1, %v1476
      %v1478 = vrot.slane %v1469, %v1477
      %v1481 = vmul.f32 %v260, %v1474
      %v1482 = vmul.f32 %v260, %v1478
      %v1483 = vadd.f32 %v1467, %v1481
      %v1484 = vadd.f32 %v1468, %v1482
      %v1485 = vld [vmem:[%s277] ss:$4 sm:$0x3]
      %v1487 = vlaneseq
      %v1488 = vshrl.u32 %v1487, 7
      %v1489 = vsub.s32 0, %v1488
      %v1490 = vrot.slane %v1485, %v1489
      %v1491 = vlaneseq
      %v1492 = vshrl.u32 %v1491, 7
      %v1493 = vsub.s32 1, %v1492
      %v1494 = vrot.slane %v1485, %v1493
      %v1497 = vmul.f32 %v282, %v1490
      %v1498 = vmul.f32 %v282, %v1494
      %v1499 = vadd.f32 %v1483, %v1497
      %v1500 = vadd.f32 %v1484, %v1498
      %v1501 = vld [vmem:[#allocation2] ss:$4 sm:$0x7]
      %v1503 = vlaneseq
      %v1504 = vshrl.u32 %v1503, 7
      %v1505 = vsub.s32 0, %v1504
      %v1506 = vrot.slane %v1501, %v1505
      %v1507 = vlaneseq
      %v1508 = vshrl.u32 %v1507, 7
      %v1509 = vsub.s32 1, %v1508
      %v1510 = vrot.slane %v1501, %v1509
      %v1511 = vlaneseq
      %v1512 = vshrl.u32 %v1511, 7
      %v1513 = vsub.s32 2, %v1512
      %v1514 = vrot.slane %v1501, %v1513
      %v1518 = vmul.f32 %v303, %v1506
      %v1519 = vmul.f32 %v303, %v1510
      %v1520 = vmul.f32 %v303, %v1514
      %1524 = vrot.lane.b32.xlu0 %v1518, 127
      %v1525 = vpop.permute.xlu0 %1524
      %1526 = vrot.lane.b32.xlu0 %v1519, 127
      %v1527 = vpop.permute.xlu0 %1526
      %1528 = vrot.lane.b32.xlu0 %v1520, 127
      %v1529 = vpop.permute.xlu0 %1528
      %v1530 = vsel %vm333, %v1525, %v1527
      %v1531 = vsel %vm333, %v1527, %v1529
      %v1534 = vadd.f32 %v1499, %v1530
      %v1535 = vadd.f32 %v1500, %v1531
      %v1536 = vld [vmem:[%s255] ss:$4 sm:$0x7]
      %v1538 = vlaneseq
      %v1539 = vshrl.u32 %v1538, 7
      %v1540 = vsub.s32 0, %v1539
      %v1541 = vrot.slane %v1536, %v1540
      %v1542 = vlaneseq
      %v1543 = vshrl.u32 %v1542, 7
      %v1544 = vsub.s32 1, %v1543
      %v1545 = vrot.slane %v1536, %v1544
      %v1546 = vlaneseq
      %v1547 = vshrl.u32 %v1546, 7
      %v1548 = vsub.s32 2, %v1547
      %v1549 = vrot.slane %v1536, %v1548
      %v1553 = vmul.f32 %v344, %v1541
      %v1554 = vmul.f32 %v344, %v1545
      %v1555 = vmul.f32 %v344, %v1549
      %1559 = vrot.lane.b32.xlu0 %v1553, 127
      %v1560 = vpop.permute.xlu0 %1559
      %1561 = vrot.lane.b32.xlu0 %v1554, 127
      %v1562 = vpop.permute.xlu0 %1561
      %1563 = vrot.lane.b32.xlu0 %v1555, 127
      %v1564 = vpop.permute.xlu0 %1563
      %v1565 = vsel %vm333, %v1560, %v1562
      %v1566 = vsel %vm333, %v1562, %v1564
      %v1569 = vadd.f32 %v1534, %v1565
      %v1570 = vadd.f32 %v1535, %v1566
      %v1571 = vld [vmem:[%s277] ss:$4 sm:$0x7]
      %v1573 = vlaneseq
      %v1574 = vshrl.u32 %v1573, 7
      %v1575 = vsub.s32 0, %v1574
      %v1576 = vrot.slane %v1571, %v1575
      %v1577 = vlaneseq
      %v1578 = vshrl.u32 %v1577, 7
      %v1579 = vsub.s32 1, %v1578
      %v1580 = vrot.slane %v1571, %v1579
      %v1581 = vlaneseq
      %v1582 = vshrl.u32 %v1581, 7
      %v1583 = vsub.s32 2, %v1582
      %v1584 = vrot.slane %v1571, %v1583
      %v1588 = vmul.f32 %v384, %v1576
      %v1589 = vmul.f32 %v384, %v1580
      %v1590 = vmul.f32 %v384, %v1584
      %1594 = vrot.lane.b32.xlu0 %v1588, 127
      %v1595 = vpop.permute.xlu0 %1594
      %1596 = vrot.lane.b32.xlu0 %v1589, 127
      %v1597 = vpop.permute.xlu0 %1596
      %1598 = vrot.lane.b32.xlu0 %v1590, 127
      %v1599 = vpop.permute.xlu0 %1598
      %v1600 = vsel %vm333, %v1595, %v1597
      %v1601 = vsel %vm333, %v1597, %v1599
      %v1604 = vadd.f32 %v1569, %v1600
      %v1605 = vadd.f32 %v1570, %v1601
      %v1606 = vmul.f32 %v423, %v1506
      %v1607 = vmul.f32 %v423, %v1510
      %v1608 = vmul.f32 %v423, %v1514
      %1612 = vrot.lane.b32.xlu0 %v1606, 126
      %v1613 = vpop.permute.xlu0 %1612
      %1614 = vrot.lane.b32.xlu0 %v1607, 126
      %v1615 = vpop.permute.xlu0 %1614
      %1616 = vrot.lane.b32.xlu0 %v1608, 126
      %v1617 = vpop.permute.xlu0 %1616
      %v1618 = vsel %vm437, %v1613, %v1615
      %v1619 = vsel %vm437, %v1615, %v1617
      %v1622 = vadd.f32 %v1604, %v1618
      %v1623 = vadd.f32 %v1605, %v1619
      %v1624 = vmul.f32 %v447, %v1541
      %v1625 = vmul.f32 %v447, %v1545
      %v1626 = vmul.f32 %v447, %v1549
      %1630 = vrot.lane.b32.xlu0 %v1624, 126
      %v1631 = vpop.permute.xlu0 %1630
      %1632 = vrot.lane.b32.xlu0 %v1625, 126
      %v1633 = vpop.permute.xlu0 %1632
      %1634 = vrot.lane.b32.xlu0 %v1626, 126
      %v1635 = vpop.permute.xlu0 %1634
      %v1636 = vsel %vm437, %v1631, %v1633
      %v1637 = vsel %vm437, %v1633, %v1635
      %v1640 = vadd.f32 %v1622, %v1636
      %v1641 = vadd.f32 %v1623, %v1637
      %v1642 = vmul.f32 %v470, %v1576
      %v1643 = vmul.f32 %v470, %v1580
      %v1644 = vmul.f32 %v470, %v1584
      %1648 = vrot.lane.b32.xlu0 %v1642, 126
      %v1649 = vpop.permute.xlu0 %1648
      %1650 = vrot.lane.b32.xlu0 %v1643, 126
      %v1651 = vpop.permute.xlu0 %1650
      %1652 = vrot.lane.b32.xlu0 %v1644, 126
      %v1653 = vpop.permute.xlu0 %1652
      %v1654 = vsel %vm437, %v1649, %v1651
      %v1655 = vsel %vm437, %v1651, %v1653
      %v1658 = vadd.f32 %v1640, %v1654
      %v1659 = vadd.f32 %v1641, %v1655
      %v1660 = vmul.f32 %v493, %v1506
      %v1661 = vmul.f32 %v493, %v1510
      %v1662 = vmul.f32 %v493, %v1514
      %1666 = vrot.lane.b32.xlu0 %v1660, 112
      %v1667 = vpop.permute.xlu0 %1666
      %1668 = vrot.lane.b32.xlu0 %v1661, 112
      %v1669 = vpop.permute.xlu0 %1668
      %1670 = vrot.lane.b32.xlu0 %v1662, 112
      %v1671 = vpop.permute.xlu0 %1670
      %v1672 = vsel %vm507, %v1667, %v1669
      %v1673 = vsel %vm507, %v1669, %v1671
      %v1676 = vadd.f32 %v1658, %v1672
      %v1677 = vadd.f32 %v1659, %v1673
      %v1678 = vmul.f32 %v517, %v1541
      %v1679 = vmul.f32 %v517, %v1545
      %v1680 = vmul.f32 %v517, %v1549
      %1684 = vrot.lane.b32.xlu0 %v1678, 112
      %v1685 = vpop.permute.xlu0 %1684
      %1686 = vrot.lane.b32.xlu0 %v1679, 112
      %v1687 = vpop.permute.xlu0 %1686
      %1688 = vrot.lane.b32.xlu0 %v1680, 112
      %v1689 = vpop.permute.xlu0 %1688
      %v1690 = vsel %vm507, %v1685, %v1687
      %v1691 = vsel %vm507, %v1687, %v1689
      %v1694 = vadd.f32 %v1676, %v1690
      %v1695 = vadd.f32 %v1677, %v1691
      %v1696 = vmul.f32 %v540, %v1576
      %v1697 = vmul.f32 %v540, %v1580
      %v1698 = vmul.f32 %v540, %v1584
      %1702 = vrot.lane.b32.xlu0 %v1696, 112
      %v1703 = vpop.permute.xlu0 %1702
      %1704 = vrot.lane.b32.xlu0 %v1697, 112
      %v1705 = vpop.permute.xlu0 %1704
      %1706 = vrot.lane.b32.xlu0 %v1698, 112
      %v1707 = vpop.permute.xlu0 %1706
      %v1708 = vsel %vm507, %v1703, %v1705
      %v1709 = vsel %vm507, %v1705, %v1707
      %v1712 = vadd.f32 %v1694, %v1708
      %v1713 = vadd.f32 %v1695, %v1709
      %v1714 = vmul.f32 %v563, %v1506
      %v1715 = vmul.f32 %v563, %v1510
      %v1716 = vmul.f32 %v563, %v1514
      %1720 = vrot.lane.b32.xlu0 %v1714, 111
      %v1721 = vpop.permute.xlu0 %1720
      %1722 = vrot.lane.b32.xlu0 %v1715, 111
      %v1723 = vpop.permute.xlu0 %1722
      %1724 = vrot.lane.b32.xlu0 %v1716, 111
      %v1725 = vpop.permute.xlu0 %1724
      %v1726 = vsel %vm577, %v1721, %v1723
      %v1727 = vsel %vm577, %v1723, %v1725
      %v1730 = vadd.f32 %v1712, %v1726
      %v1731 = vadd.f32 %v1713, %v1727
      %v1732 = vmul.f32 %v587, %v1541
      %v1733 = vmul.f32 %v587, %v1545
      %v1734 = vmul.f32 %v587, %v1549
      %1738 = vrot.lane.b32.xlu0 %v1732, 111
      %v1739 = vpop.permute.xlu0 %1738
      %1740 = vrot.lane.b32.xlu0 %v1733, 111
      %v1741 = vpop.permute.xlu0 %1740
      %1742 = vrot.lane.b32.xlu0 %v1734, 111
      %v1743 = vpop.permute.xlu0 %1742
      %v1744 = vsel %vm577, %v1739, %v1741
      %v1745 = vsel %vm577, %v1741, %v1743
      %v1748 = vadd.f32 %v1730, %v1744
      %v1749 = vadd.f32 %v1731, %v1745
      %v1750 = vmul.f32 %v610, %v1576
      %v1751 = vmul.f32 %v610, %v1580
      %v1752 = vmul.f32 %v610, %v1584
      %1756 = vrot.lane.b32.xlu0 %v1750, 111
      %v1757 = vpop.permute.xlu0 %1756
      %1758 = vrot.lane.b32.xlu0 %v1751, 111
      %v1759 = vpop.permute.xlu0 %1758
      %1760 = vrot.lane.b32.xlu0 %v1752, 111
      %v1761 = vpop.permute.xlu0 %1760
      %v1762 = vsel %vm577, %v1757, %v1759
      %v1763 = vsel %vm577, %v1759, %v1761
      %v1766 = vadd.f32 %v1748, %v1762
      %v1767 = vadd.f32 %v1749, %v1763
      %v1768 = vmul.f32 %v633, %v1506
      %v1769 = vmul.f32 %v633, %v1510
      %v1770 = vmul.f32 %v633, %v1514
      %1774 = vrot.lane.b32.xlu0 %v1768, 110
      %v1775 = vpop.permute.xlu0 %1774
      %1776 = vrot.lane.b32.xlu0 %v1769, 110
      %v1777 = vpop.permute.xlu0 %1776
      %1778 = vrot.lane.b32.xlu0 %v1770, 110
      %v1779 = vpop.permute.xlu0 %1778
      %v1780 = vsel %vm647, %v1775, %v1777
      %v1781 = vsel %vm647, %v1777, %v1779
      %v1784 = vadd.f32 %v1766, %v1780
      %v1785 = vadd.f32 %v1767, %v1781
      %v1786 = vmul.f32 %v657, %v1541
      %v1787 = vmul.f32 %v657, %v1545
      %v1788 = vmul.f32 %v657, %v1549
      %1792 = vrot.lane.b32.xlu0 %v1786, 110
      %v1793 = vpop.permute.xlu0 %1792
      %1794 = vrot.lane.b32.xlu0 %v1787, 110
      %v1795 = vpop.permute.xlu0 %1794
      %1796 = vrot.lane.b32.xlu0 %v1788, 110
      %v1797 = vpop.permute.xlu0 %1796
      %v1798 = vsel %vm647, %v1793, %v1795
      %v1799 = vsel %vm647, %v1795, %v1797
      %v1802 = vadd.f32 %v1784, %v1798
      %v1803 = vadd.f32 %v1785, %v1799
      %v1804 = vmul.f32 %v680, %v1576
      %v1805 = vmul.f32 %v680, %v1580
      %v1806 = vmul.f32 %v680, %v1584
      %1810 = vrot.lane.b32.xlu0 %v1804, 110
      %v1811 = vpop.permute.xlu0 %1810
      %1812 = vrot.lane.b32.xlu0 %v1805, 110
      %v1813 = vpop.permute.xlu0 %1812
      %1814 = vrot.lane.b32.xlu0 %v1806, 110
      %v1815 = vpop.permute.xlu0 %1814
      %v1816 = vsel %vm647, %v1811, %v1813
      %v1817 = vsel %vm647, %v1813, %v1815
      %v1820 = vadd.f32 %v1802, %v1816
      %v1821 = vadd.f32 %v1803, %v1817
      %v1822 = vmul.f32 %v703, %v1506
      %v1823 = vmul.f32 %v703, %v1510
      %v1824 = vmul.f32 %v703, %v1514
      %1828 = vrot.lane.b32.xlu0 %v1822, 96
      %v1829 = vpop.permute.xlu0 %1828
      %1830 = vrot.lane.b32.xlu0 %v1823, 96
      %v1831 = vpop.permute.xlu0 %1830
      %1832 = vrot.lane.b32.xlu0 %v1824, 96
      %v1833 = vpop.permute.xlu0 %1832
      %v1834 = vsel %vm717, %v1829, %v1831
      %v1835 = vsel %vm717, %v1831, %v1833
      %v1838 = vadd.f32 %v1820, %v1834
      %v1839 = vadd.f32 %v1821, %v1835
      %v1840 = vmul.f32 %v727, %v1541
      %v1841 = vmul.f32 %v727, %v1545
      %v1842 = vmul.f32 %v727, %v1549
      %1846 = vrot.lane.b32.xlu0 %v1840, 96
      %v1847 = vpop.permute.xlu0 %1846
      %1848 = vrot.lane.b32.xlu0 %v1841, 96
      %v1849 = vpop.permute.xlu0 %1848
      %1850 = vrot.lane.b32.xlu0 %v1842, 96
      %v1851 = vpop.permute.xlu0 %1850
      %v1852 = vsel %vm717, %v1847, %v1849
      %v1853 = vsel %vm717, %v1849, %v1851
      %v1856 = vadd.f32 %v1838, %v1852
      %v1857 = vadd.f32 %v1839, %v1853
      %v1858 = vmul.f32 %v750, %v1576
      %v1859 = vmul.f32 %v750, %v1580
      %v1860 = vmul.f32 %v750, %v1584
      %1864 = vrot.lane.b32.xlu0 %v1858, 96
      %v1865 = vpop.permute.xlu0 %1864
      %1866 = vrot.lane.b32.xlu0 %v1859, 96
      %v1867 = vpop.permute.xlu0 %1866
      %1868 = vrot.lane.b32.xlu0 %v1860, 96
      %v1869 = vpop.permute.xlu0 %1868
      %v1870 = vsel %vm717, %v1865, %v1867
      %v1871 = vsel %vm717, %v1867, %v1869
      %v1874 = vadd.f32 %v1856, %v1870
      %v1875 = vadd.f32 %v1857, %v1871
      %v1876 = vmul.f32 %v773, %v1506
      %v1877 = vmul.f32 %v773, %v1510
      %v1878 = vmul.f32 %v773, %v1514
      %1882 = vrot.lane.b32.xlu0 %v1876, 95
      %v1883 = vpop.permute.xlu0 %1882
      %1884 = vrot.lane.b32.xlu0 %v1877, 95
      %v1885 = vpop.permute.xlu0 %1884
      %1886 = vrot.lane.b32.xlu0 %v1878, 95
      %v1887 = vpop.permute.xlu0 %1886
      %v1888 = vsel %vm787, %v1883, %v1885
      %v1889 = vsel %vm787, %v1885, %v1887
      %v1892 = vadd.f32 %v1874, %v1888
      %v1893 = vadd.f32 %v1875, %v1889
      %v1894 = vmul.f32 %v797, %v1541
      %v1895 = vmul.f32 %v797, %v1545
      %v1896 = vmul.f32 %v797, %v1549
      %1900 = vrot.lane.b32.xlu0 %v1894, 95
      %v1901 = vpop.permute.xlu0 %1900
      %1902 = vrot.lane.b32.xlu0 %v1895, 95
      %v1903 = vpop.permute.xlu0 %1902
      %1904 = vrot.lane.b32.xlu0 %v1896, 95
      %v1905 = vpop.permute.xlu0 %1904
      %v1906 = vsel %vm787, %v1901, %v1903
      %v1907 = vsel %vm787, %v1903, %v1905
      %v1910 = vadd.f32 %v1892, %v1906
      %v1911 = vadd.f32 %v1893, %v1907
      %v1912 = vmul.f32 %v820, %v1576
      %v1913 = vmul.f32 %v820, %v1580
      %v1914 = vmul.f32 %v820, %v1584
      %1918 = vrot.lane.b32.xlu0 %v1912, 95
      %v1919 = vpop.permute.xlu0 %1918
      %1920 = vrot.lane.b32.xlu0 %v1913, 95
      %v1921 = vpop.permute.xlu0 %1920
      %1922 = vrot.lane.b32.xlu0 %v1914, 95
      %v1923 = vpop.permute.xlu0 %1922
      %v1924 = vsel %vm787, %v1919, %v1921
      %v1925 = vsel %vm787, %v1921, %v1923
      %v1928 = vadd.f32 %v1910, %v1924
      %v1929 = vadd.f32 %v1911, %v1925
      %v1930 = vmul.f32 %v843, %v1506
      %v1931 = vmul.f32 %v843, %v1510
      %v1932 = vmul.f32 %v843, %v1514
      %1936 = vrot.lane.b32.xlu0 %v1930, 94
      %v1937 = vpop.permute.xlu0 %1936
      %1938 = vrot.lane.b32.xlu0 %v1931, 94
      %v1939 = vpop.permute.xlu0 %1938
      %1940 = vrot.lane.b32.xlu0 %v1932, 94
      %v1941 = vpop.permute.xlu0 %1940
      %v1942 = vsel %vm857, %v1937, %v1939
      %v1943 = vsel %vm857, %v1939, %v1941
      %v1946 = vadd.f32 %v1928, %v1942
      %v1947 = vadd.f32 %v1929, %v1943
      %v1948 = vmul.f32 %v867, %v1541
      %v1949 = vmul.f32 %v867, %v1545
      %v1950 = vmul.f32 %v867, %v1549
      %1954 = vrot.lane.b32.xlu0 %v1948, 94
      %v1955 = vpop.permute.xlu0 %1954
      %1956 = vrot.lane.b32.xlu0 %v1949, 94
      %v1957 = vpop.permute.xlu0 %1956
      %1958 = vrot.lane.b32.xlu0 %v1950, 94
      %v1959 = vpop.permute.xlu0 %1958
      %v1960 = vsel %vm857, %v1955, %v1957
      %v1961 = vsel %vm857, %v1957, %v1959
      %v1964 = vadd.f32 %v1946, %v1960
      %v1965 = vadd.f32 %v1947, %v1961
      %v1966 = vmul.f32 %v890, %v1576
      %v1967 = vmul.f32 %v890, %v1580
      %v1968 = vmul.f32 %v890, %v1584
      %1972 = vrot.lane.b32.xlu0 %v1966, 94
      %v1973 = vpop.permute.xlu0 %1972
      %1974 = vrot.lane.b32.xlu0 %v1967, 94
      %v1975 = vpop.permute.xlu0 %1974
      %1976 = vrot.lane.b32.xlu0 %v1968, 94
      %v1977 = vpop.permute.xlu0 %1976
      %v1978 = vsel %vm857, %v1973, %v1975
      %v1979 = vsel %vm857, %v1975, %v1977
      %v1982 = vadd.f32 %v1964, %v1978
      %v1983 = vadd.f32 %v1965, %v1979
      %v1986 = vcombine.low %v1982, %v1983
      %1988 = vst [vmem:[%s170] sm:$0x77] %v1986
      %p1989 = scmp.lt.s32.totalorder %s14, 1
      %s1990 = scalar_select %p1989, %s14, 1
      %s1991 = smul.addr %s1990, 2
      %s1992 = smul.addr %s1991, 4
      %s1993 = scalar_lea.vmem %s3, %s1992
      // Predicated region
      $region33: #{model_forward.1} parent=31 // pred_check
        %p1994 = pneg %p100
      $region34: #{model_forward.1} parent=31 // pred_check_branch
        %1996 = sbr.rel (%p1994) target = $region36
      $region35: #{model_forward.1} parent=31 // pred_region
        _
      $region36: #{model_forward.1} parent=31 // pred_fallthru
        _
    $region32: #{model_forward.1} parent=5 // pred_fallthru
      _
    %p1997 = scmp.le.s32.totalorder 2, %s9
    // Predicated region
    $region37: #{model_forward.1} parent=5 // pred_check
      %p1998 = pneg %p1997
    $region38: #{model_forward.1} parent=5 // pred_check_branch
      %2000 = sbr.rel (%p1998) target = $region40
    $region39: #{model_forward.1} parent=5 // pred_region
      %s2001 = ssub.s32 %s9, 2
      // Predicated region
      $region41: #{model_forward.1} parent=39 // pred_check
        %p2002 = pneg %p106
      $region42: #{model_forward.1} parent=39 // pred_check_branch
        %2004 = sbr.rel (%p2002) target = $region44
      $region43: #{model_forward.1} parent=39 // pred_region
        %p2005 = scmp.lt.s32.totalorder %s15, 1
        %s2006 = scalar_select %p2005, %s15, 1
        %s2007 = smul.addr %s2006, 2
        %s2008 = smul.addr %s2007, 4
        %s2009 = scalar_lea.vmem %s3, %s2008
      $region44: #{model_forward.1} parent=39 // pred_fallthru
        _
    $region40: #{model_forward.1} parent=5 // pred_fallthru
      _
  $region6: #{model_forward.1} parent=0 // loop_footer
    %s13 = sadd.s32 1, %s9
  $region7: #{model_forward.1} parent=0 // loop_footer_branch
    %8 = sbr.rel target = $region3
  $region8: #{model_forward.1} parent=0 // loop_exit
    _

</llo_original>
